<compile_context>
chip_gen: v5e
topology: v5e:2x2
jax: 0.10.0
libtpu: 0.0.40
codegen_flags: <defaults>
</compile_context>

<pallas_src>
import jax
import jax.numpy as jnp
from jax.experimental import pallas as pl
from jax.experimental.pallas import tpu as pltpu

NEG_SLOPE = 0.01   # nn.LeakyReLU default
BN_EPS = 1e-5      # nn.BatchNorm1d default
K_CHEB = 3

CHEB_CHANNELS = [6, 32, 128, 128, 32, 16]   # ChebMeshConv chain
LINEAR_OUT = 3
LINEAR_OUT_PAD = 128    # lane-dense padded head output (sliced to 3 in wrapper)
F_IN_PAD = 8            # pad first-layer feature width 6 -> 8 (zero columns)


# ----------------------------- fused Pallas kernel ------------------------- #

def _cheb_bn_lrelu(lap, x, w, gamma, beta):
    """One ChebConv(K=3) + BatchNorm1d(train) + LeakyReLU block (on values)."""
    # Chebyshev recurrence: Z0 = X, Z1 = L_hat X, Z2 = 2 L_hat Z1 - Z0.
    z0 = x
    z1 = jnp.dot(lap, z0, preferred_element_type=jnp.float32)
    z2 = 2.0 * jnp.dot(lap, z1, preferred_element_type=jnp.float32) - z0
    h = (jnp.dot(z0, w[0], preferred_element_type=jnp.float32)
         + jnp.dot(z1, w[1], preferred_element_type=jnp.float32)
         + jnp.dot(z2, w[2], preferred_element_type=jnp.float32))
    # ChebConv bias omitted: exactly cancelled by the BN mean subtraction below.
    # One-pass batch statistics (sum & sum-of-squares) over the node axis.
    inv_n = 1.0 / h.shape[0]
    mean = jnp.sum(h, axis=0, keepdims=True) * inv_n
    ex2 = jnp.sum(h * h, axis=0, keepdims=True) * inv_n
    var = ex2 - mean * mean
    # Fold BN into a single FMA: hn = h * scale + shift.
    scale = gamma * jax.lax.rsqrt(var + BN_EPS)
    shift = beta - mean * scale
    hn = h * scale + shift
    return jnp.where(hn >= 0, hn, NEG_SLOPE * hn)


def chebmeshnet_kernel(lap_ref, x_ref,
                       w1_ref, g1_ref, b1_ref,
                       w2_ref, g2_ref, b2_ref,
                       w3_ref, g3_ref, b3_ref,
                       w4_ref, g4_ref, b4_ref,
                       w5_ref, g5_ref, b5_ref,
                       wlin_ref, blin_ref,
                       o_ref):
    """Entire forward pass: activations never leave VMEM."""
    lap = lap_ref[...]
    h = x_ref[...]
    for w_ref, g_ref, b_ref in ((w1_ref, g1_ref, b1_ref),
                                (w2_ref, g2_ref, b2_ref),
                                (w3_ref, g3_ref, b3_ref),
                                (w4_ref, g4_ref, b4_ref),
                                (w5_ref, g5_ref, b5_ref)):
        h = _cheb_bn_lrelu(lap, h, w_ref[...], g_ref[...], b_ref[...])
    # Linear head into a lane-dense padded (N, 128) output (zero-padded weights).
    o_ref[...] = (jnp.dot(h, wlin_ref[...], preferred_element_type=jnp.float32)
                  + blin_ref[...])


# ------------------------------ wrappers ----------------------------------- #

_VMEM = pl.BlockSpec(memory_space=pltpu.MemorySpace.VMEM)


@jax.jit
def chebmeshnet_forward(params, x, lap):
    n = x.shape[0]
    # Pad first-layer features 6 -> 8 with zero columns (matching zero weight rows).
    x_pad = jnp.pad(x, ((0, 0), (0, F_IN_PAD - x.shape[1])))
    flat_inputs = [lap, x_pad]
    for (w, gamma, beta) in params["cheb"]:
        flat_inputs += [w, gamma, beta]
    wlin, blin = params["lin"]
    flat_inputs += [wlin, blin]
    out_pad = pl.pallas_call(
        chebmeshnet_kernel,
        out_shape=jax.ShapeDtypeStruct((n, LINEAR_OUT_PAD), jnp.float32),
        in_specs=[_VMEM] * len(flat_inputs),
        out_specs=_VMEM,
    )(*flat_inputs)
    # Slice padded lane-dense head output back to the real 3 classes.
    return out_pad[:, :LINEAR_OUT]


# --------------------------- model construction ---------------------------- #

def init_params(key):
    params = {"cheb": [], "lin": None}
    kernel_f_ins = [F_IN_PAD] + CHEB_CHANNELS[1:-1]   # widths as seen by the kernel
    real_f_ins = CHEB_CHANNELS[:-1]
    f_outs = CHEB_CHANNELS[1:]
    for f_in_pad, f_in, f_out in zip(kernel_f_ins, real_f_ins, f_outs):
        key, kw = jax.random.split(key)
        limit = (6.0 / (f_in + f_out)) ** 0.5          # glorot (ChebConv default)
        w = jax.random.uniform(kw, (K_CHEB, f_in, f_out), jnp.float32, -limit, limit)
        if f_in_pad != f_in:                           # zero rows for padded features
            w = jnp.pad(w, ((0, 0), (0, f_in_pad - f_in), (0, 0)))
        gamma = jnp.ones((1, f_out), jnp.float32)      # BatchNorm1d weight
        beta = jnp.zeros((1, f_out), jnp.float32)      # BatchNorm1d bias
        params["cheb"].append((w, gamma, beta))
    # Linear(16, 3) head (PyTorch default init), zero-padded to 128 output lanes.
    f_in = CHEB_CHANNELS[-1]
    key, kw, kb = jax.random.split(key, 3)
    bound = 1.0 / (f_in ** 0.5)
    w = jax.random.uniform(kw, (f_in, LINEAR_OUT), jnp.float32, -bound, bound)
    b = jax.random.uniform(kb, (1, LINEAR_OUT), jnp.float32, -bound, bound)
    w = jnp.pad(w, ((0, 0), (0, LINEAR_OUT_PAD - LINEAR_OUT)))
    b = jnp.pad(b, ((0, 0), (0, LINEAR_OUT_PAD - LINEAR_OUT)))
    params["lin"] = (w, b)
    return params


def scaled_laplacian(edge_index, num_nodes):
    """Scaled Laplacian for ChebConv:  L_hat = 2 L / lambda_max - I  with
    L = I - D^-1/2 A D^-1/2 and lambda_max = 2, i.e.  L_hat = -D^-1/2 A D^-1/2."""
    # TODO(synk): exact ChebMeshConv mesh Laplacian (e.g. cotangent weights) is not
    # given; a symmetric-normalized graph Laplacian with lambda_max=2 is used.
    src, dst = edge_index[0], edge_index[1]
    a = jnp.zeros((num_nodes, num_nodes), jnp.float32).at[dst, src].add(1.0)
    deg = jnp.sum(a, axis=1)
    dinv = jnp.where(deg > 0, jax.lax.rsqrt(deg), 0.0)
    a_norm = a * dinv[:, None] * dinv[None, :]
    return -a_norm


# --------------------------------- main ------------------------------------ #

if __name__ == "__main__":
    key = jax.random.PRNGKey(0)
    k_x, k_p = jax.random.split(key)

    N = 32  # number of mesh vertices
    # Undirected ring graph: edges (i -> i+1) and (i+1 -> i), edge_index (2, 2N).
    idx = jnp.arange(N, dtype=jnp.int32)
    nxt = (idx + 1) % N
    edge_index = jnp.stack(
        [jnp.concatenate([idx, nxt]), jnp.concatenate([nxt, idx])], axis=0
    )

    x = jax.random.normal(k_x, (N, CHEB_CHANNELS[0]), jnp.float32)
    params = init_params(k_p)
    lap = scaled_laplacian(edge_index, N)

    out = chebmeshnet_forward(params, x, lap)
    jax.block_until_ready(out)
    assert out.shape == (N, LINEAR_OUT) and out.dtype == jnp.float32
    assert bool(jnp.all(jnp.isfinite(out)))
    print("KERNEL_OK")
</pallas_src>

<mosaic_0001>
module attributes {stable_mosaic.version = 11 : i64} {
  func.func @chebmeshnet_kernel(%arg0: memref<32x32xf32, #tpu.memory_space<vmem>>, %arg1: memref<32x8xf32, #tpu.memory_space<vmem>>, %arg2: memref<3x8x32xf32, #tpu.memory_space<vmem>>, %arg3: memref<1x32xf32, #tpu.memory_space<vmem>>, %arg4: memref<1x32xf32, #tpu.memory_space<vmem>>, %arg5: memref<3x32x128xf32, #tpu.memory_space<vmem>>, %arg6: memref<1x128xf32, #tpu.memory_space<vmem>>, %arg7: memref<1x128xf32, #tpu.memory_space<vmem>>, %arg8: memref<3x128x128xf32, #tpu.memory_space<vmem>>, %arg9: memref<1x128xf32, #tpu.memory_space<vmem>>, %arg10: memref<1x128xf32, #tpu.memory_space<vmem>>, %arg11: memref<3x128x32xf32, #tpu.memory_space<vmem>>, %arg12: memref<1x32xf32, #tpu.memory_space<vmem>>, %arg13: memref<1x32xf32, #tpu.memory_space<vmem>>, %arg14: memref<3x32x16xf32, #tpu.memory_space<vmem>>, %arg15: memref<1x16xf32, #tpu.memory_space<vmem>>, %arg16: memref<1x16xf32, #tpu.memory_space<vmem>>, %arg17: memref<16x128xf32, #tpu.memory_space<vmem>>, %arg18: memref<1x128xf32, #tpu.memory_space<vmem>>, %arg19: memref<32x128xf32, #tpu.memory_space<vmem>>) attributes {dimension_semantics = [], scalar_prefetch = 0 : i64, scratch_operands = 0 : i64, tpu.core_type = #tpu.core_type<tc>} {
    %c0 = arith.constant 0 : index
    %c0_0 = arith.constant 0 : index
    %0 = vector.load %arg0[%c0, %c0_0] : memref<32x32xf32, #tpu.memory_space<vmem>>, vector<32x32xf32>
    %c0_1 = arith.constant 0 : index
    %c0_2 = arith.constant 0 : index
    %1 = vector.load %arg1[%c0_1, %c0_2] : memref<32x8xf32, #tpu.memory_space<vmem>>, vector<32x8xf32>
    %c0_3 = arith.constant 0 : index
    %c0_4 = arith.constant 0 : index
    %c0_5 = arith.constant 0 : index
    %2 = vector.load %arg2[%c0_3, %c0_4, %c0_5] : memref<3x8x32xf32, #tpu.memory_space<vmem>>, vector<3x8x32xf32>
    %c0_6 = arith.constant 0 : index
    %c0_7 = arith.constant 0 : index
    %3 = vector.load %arg3[%c0_6, %c0_7] : memref<1x32xf32, #tpu.memory_space<vmem>>, vector<1x32xf32>
    %c0_8 = arith.constant 0 : index
    %c0_9 = arith.constant 0 : index
    %4 = vector.load %arg4[%c0_8, %c0_9] : memref<1x32xf32, #tpu.memory_space<vmem>>, vector<1x32xf32>
    %cst = arith.constant dense<0.000000e+00> : vector<32x8xf32>
    %5 = tpu.matmul %0, %1, %cst {dimension_numbers = #tpu.dot_dimension_numbers<[1], [0], [0], [1], [0, 0, 1, 1], [], []>} : vector<32x32xf32>, vector<32x8xf32>, vector<32x8xf32> -> vector<32x8xf32>
    %cst_10 = arith.constant dense<0.000000e+00> : vector<32x8xf32>
    %6 = tpu.matmul %0, %5, %cst_10 {dimension_numbers = #tpu.dot_dimension_numbers<[1], [0], [0], [1], [0, 0, 1, 1], [], []>} : vector<32x32xf32>, vector<32x8xf32>, vector<32x8xf32> -> vector<32x8xf32>
    %cst_11 = arith.constant 2.000000e+00 : f32
    %7 = vector.broadcast %cst_11 : f32 to vector<32x8xf32>
    %8 = arith.mulf %7, %6 : vector<32x8xf32>
    %9 = arith.subf %8, %1 : vector<32x8xf32>
    %10 = vector.extract_strided_slice %2 {offsets = [0, 0, 0], sizes = [1, 8, 32], strides = [1, 1, 1]} : vector<3x8x32xf32> to vector<1x8x32xf32>
    %11 = vector.shape_cast %10 : vector<1x8x32xf32> to vector<8x32xf32>
    %cst_12 = arith.constant dense<0.000000e+00> : vector<32x32xf32>
    %12 = tpu.matmul %1, %11, %cst_12 {dimension_numbers = #tpu.dot_dimension_numbers<[1], [0], [0], [1], [0, 0, 1, 1], [], []>} : vector<32x8xf32>, vector<8x32xf32>, vector<32x32xf32> -> vector<32x32xf32>
    %13 = vector.extract_strided_slice %2 {offsets = [1, 0, 0], sizes = [1, 8, 32], strides = [1, 1, 1]} : vector<3x8x32xf32> to vector<1x8x32xf32>
    %14 = vector.shape_cast %13 : vector<1x8x32xf32> to vector<8x32xf32>
    %cst_13 = arith.constant dense<0.000000e+00> : vector<32x32xf32>
    %15 = tpu.matmul %5, %14, %cst_13 {dimension_numbers = #tpu.dot_dimension_numbers<[1], [0], [0], [1], [0, 0, 1, 1], [], []>} : vector<32x8xf32>, vector<8x32xf32>, vector<32x32xf32> -> vector<32x32xf32>
    %16 = arith.addf %12, %15 : vector<32x32xf32>
    %17 = vector.extract_strided_slice %2 {offsets = [2, 0, 0], sizes = [1, 8, 32], strides = [1, 1, 1]} : vector<3x8x32xf32> to vector<1x8x32xf32>
    %18 = vector.shape_cast %17 : vector<1x8x32xf32> to vector<8x32xf32>
    %cst_14 = arith.constant dense<0.000000e+00> : vector<32x32xf32>
    %19 = tpu.matmul %9, %18, %cst_14 {dimension_numbers = #tpu.dot_dimension_numbers<[1], [0], [0], [1], [0, 0, 1, 1], [], []>} : vector<32x8xf32>, vector<8x32xf32>, vector<32x32xf32> -> vector<32x32xf32>
    %20 = arith.addf %16, %19 : vector<32x32xf32>
    %cst_15 = arith.constant dense<0.000000e+00> : vector<32xf32>
    %21 = vector.multi_reduction <add>, %20, %cst_15 [0] : vector<32x32xf32> to vector<32xf32>
    %22 = vector.shape_cast %21 : vector<32xf32> to vector<1x32xf32>
    %cst_16 = arith.constant 3.125000e-02 : f32
    %23 = vector.broadcast %cst_16 : f32 to vector<1x32xf32>
    %24 = arith.mulf %22, %23 : vector<1x32xf32>
    %25 = arith.mulf %20, %20 : vector<32x32xf32>
    %cst_17 = arith.constant dense<0.000000e+00> : vector<32xf32>
    %26 = vector.multi_reduction <add>, %25, %cst_17 [0] : vector<32x32xf32> to vector<32xf32>
    %27 = vector.shape_cast %26 : vector<32xf32> to vector<1x32xf32>
    %cst_18 = arith.constant 3.125000e-02 : f32
    %28 = vector.broadcast %cst_18 : f32 to vector<1x32xf32>
    %29 = arith.mulf %27, %28 : vector<1x32xf32>
    %30 = arith.mulf %24, %24 : vector<1x32xf32>
    %31 = arith.subf %29, %30 : vector<1x32xf32>
    %cst_19 = arith.constant 9.99999974E-6 : f32
    %32 = vector.broadcast %cst_19 : f32 to vector<1x32xf32>
    %33 = arith.addf %31, %32 : vector<1x32xf32>
    %34 = math.rsqrt %33 : vector<1x32xf32>
    %35 = arith.mulf %3, %34 : vector<1x32xf32>
    %36 = arith.mulf %24, %35 : vector<1x32xf32>
    %37 = arith.subf %4, %36 : vector<1x32xf32>
    %38 = vector.broadcast %35 : vector<1x32xf32> to vector<32x32xf32>
    %39 = arith.mulf %20, %38 : vector<32x32xf32>
    %40 = vector.broadcast %37 : vector<1x32xf32> to vector<32x32xf32>
    %41 = arith.addf %39, %40 : vector<32x32xf32>
    %cst_20 = arith.constant 0.000000e+00 : f32
    %42 = vector.broadcast %cst_20 : f32 to vector<32x32xf32>
    %43 = arith.cmpf oge, %41, %42 : vector<32x32xf32>
    %cst_21 = arith.constant 0.00999999977 : f32
    %44 = vector.broadcast %cst_21 : f32 to vector<32x32xf32>
    %45 = arith.mulf %44, %41 : vector<32x32xf32>
    %46 = arith.select %43, %41, %45 : vector<32x32xi1>, vector<32x32xf32>
    %c0_22 = arith.constant 0 : index
    %c0_23 = arith.constant 0 : index
    %c0_24 = arith.constant 0 : index
    %47 = vector.load %arg5[%c0_22, %c0_23, %c0_24] : memref<3x32x128xf32, #tpu.memory_space<vmem>>, vector<3x32x128xf32>
    %c0_25 = arith.constant 0 : index
    %c0_26 = arith.constant 0 : index
    %48 = vector.load %arg6[%c0_25, %c0_26] : memref<1x128xf32, #tpu.memory_space<vmem>>, vector<1x128xf32>
    %c0_27 = arith.constant 0 : index
    %c0_28 = arith.constant 0 : index
    %49 = vector.load %arg7[%c0_27, %c0_28] : memref<1x128xf32, #tpu.memory_space<vmem>>, vector<1x128xf32>
    %cst_29 = arith.constant dense<0.000000e+00> : vector<32x32xf32>
    %50 = tpu.matmul %0, %46, %cst_29 {dimension_numbers = #tpu.dot_dimension_numbers<[1], [0], [0], [1], [0, 0, 1, 1], [], []>} : vector<32x32xf32>, vector<32x32xf32>, vector<32x32xf32> -> vector<32x32xf32>
    %cst_30 = arith.constant dense<0.000000e+00> : vector<32x32xf32>
    %51 = tpu.matmul %0, %50, %cst_30 {dimension_numbers = #tpu.dot_dimension_numbers<[1], [0], [0], [1], [0, 0, 1, 1], [], []>} : vector<32x32xf32>, vector<32x32xf32>, vector<32x32xf32> -> vector<32x32xf32>
    %cst_31 = arith.constant 2.000000e+00 : f32
    %52 = vector.broadcast %cst_31 : f32 to vector<32x32xf32>
    %53 = arith.mulf %52, %51 : vector<32x32xf32>
    %54 = arith.subf %53, %46 : vector<32x32xf32>
    %55 = vector.extract_strided_slice %47 {offsets = [0, 0, 0], sizes = [1, 32, 128], strides = [1, 1, 1]} : vector<3x32x128xf32> to vector<1x32x128xf32>
    %56 = vector.shape_cast %55 : vector<1x32x128xf32> to vector<32x128xf32>
    %cst_32 = arith.constant dense<0.000000e+00> : vector<32x128xf32>
    %57 = tpu.matmul %46, %56, %cst_32 {dimension_numbers = #tpu.dot_dimension_numbers<[1], [0], [0], [1], [0, 0, 1, 1], [], []>} : vector<32x32xf32>, vector<32x128xf32>, vector<32x128xf32> -> vector<32x128xf32>
    %58 = vector.extract_strided_slice %47 {offsets = [1, 0, 0], sizes = [1, 32, 128], strides = [1, 1, 1]} : vector<3x32x128xf32> to vector<1x32x128xf32>
    %59 = vector.shape_cast %58 : vector<1x32x128xf32> to vector<32x128xf32>
    %cst_33 = arith.constant dense<0.000000e+00> : vector<32x128xf32>
    %60 = tpu.matmul %50, %59, %cst_33 {dimension_numbers = #tpu.dot_dimension_numbers<[1], [0], [0], [1], [0, 0, 1, 1], [], []>} : vector<32x32xf32>, vector<32x128xf32>, vector<32x128xf32> -> vector<32x128xf32>
    %61 = arith.addf %57, %60 : vector<32x128xf32>
    %62 = vector.extract_strided_slice %47 {offsets = [2, 0, 0], sizes = [1, 32, 128], strides = [1, 1, 1]} : vector<3x32x128xf32> to vector<1x32x128xf32>
    %63 = vector.shape_cast %62 : vector<1x32x128xf32> to vector<32x128xf32>
    %cst_34 = arith.constant dense<0.000000e+00> : vector<32x128xf32>
    %64 = tpu.matmul %54, %63, %cst_34 {dimension_numbers = #tpu.dot_dimension_numbers<[1], [0], [0], [1], [0, 0, 1, 1], [], []>} : vector<32x32xf32>, vector<32x128xf32>, vector<32x128xf32> -> vector<32x128xf32>
    %65 = arith.addf %61, %64 : vector<32x128xf32>
    %cst_35 = arith.constant dense<0.000000e+00> : vector<128xf32>
    %66 = vector.multi_reduction <add>, %65, %cst_35 [0] : vector<32x128xf32> to vector<128xf32>
    %67 = vector.shape_cast %66 : vector<128xf32> to vector<1x128xf32>
    %cst_36 = arith.constant 3.125000e-02 : f32
    %68 = vector.broadcast %cst_36 : f32 to vector<1x128xf32>
    %69 = arith.mulf %67, %68 : vector<1x128xf32>
    %70 = arith.mulf %65, %65 : vector<32x128xf32>
    %cst_37 = arith.constant dense<0.000000e+00> : vector<128xf32>
    %71 = vector.multi_reduction <add>, %70, %cst_37 [0] : vector<32x128xf32> to vector<128xf32>
    %72 = vector.shape_cast %71 : vector<128xf32> to vector<1x128xf32>
    %cst_38 = arith.constant 3.125000e-02 : f32
    %73 = vector.broadcast %cst_38 : f32 to vector<1x128xf32>
    %74 = arith.mulf %72, %73 : vector<1x128xf32>
    %75 = arith.mulf %69, %69 : vector<1x128xf32>
    %76 = arith.subf %74, %75 : vector<1x128xf32>
    %cst_39 = arith.constant 9.99999974E-6 : f32
    %77 = vector.broadcast %cst_39 : f32 to vector<1x128xf32>
    %78 = arith.addf %76, %77 : vector<1x128xf32>
    %79 = math.rsqrt %78 : vector<1x128xf32>
    %80 = arith.mulf %48, %79 : vector<1x128xf32>
    %81 = arith.mulf %69, %80 : vector<1x128xf32>
    %82 = arith.subf %49, %81 : vector<1x128xf32>
    %83 = vector.broadcast %80 : vector<1x128xf32> to vector<32x128xf32>
    %84 = arith.mulf %65, %83 : vector<32x128xf32>
    %85 = vector.broadcast %82 : vector<1x128xf32> to vector<32x128xf32>
    %86 = arith.addf %84, %85 : vector<32x128xf32>
    %cst_40 = arith.constant 0.000000e+00 : f32
    %87 = vector.broadcast %cst_40 : f32 to vector<32x128xf32>
    %88 = arith.cmpf oge, %86, %87 : vector<32x128xf32>
    %cst_41 = arith.constant 0.00999999977 : f32
    %89 = vector.broadcast %cst_41 : f32 to vector<32x128xf32>
    %90 = arith.mulf %89, %86 : vector<32x128xf32>
    %91 = arith.select %88, %86, %90 : vector<32x128xi1>, vector<32x128xf32>
    %c0_42 = arith.constant 0 : index
    %c0_43 = arith.constant 0 : index
    %c0_44 = arith.constant 0 : index
    %92 = vector.load %arg8[%c0_42, %c0_43, %c0_44] : memref<3x128x128xf32, #tpu.memory_space<vmem>>, vector<3x128x128xf32>
    %c0_45 = arith.constant 0 : index
    %c0_46 = arith.constant 0 : index
    %93 = vector.load %arg9[%c0_45, %c0_46] : memref<1x128xf32, #tpu.memory_space<vmem>>, vector<1x128xf32>
    %c0_47 = arith.constant 0 : index
    %c0_48 = arith.constant 0 : index
    %94 = vector.load %arg10[%c0_47, %c0_48] : memref<1x128xf32, #tpu.memory_space<vmem>>, vector<1x128xf32>
    %cst_49 = arith.constant dense<0.000000e+00> : vector<32x128xf32>
    %95 = tpu.matmul %0, %91, %cst_49 {dimension_numbers = #tpu.dot_dimension_numbers<[1], [0], [0], [1], [0, 0, 1, 1], [], []>} : vector<32x32xf32>, vector<32x128xf32>, vector<32x128xf32> -> vector<32x128xf32>
    %cst_50 = arith.constant dense<0.000000e+00> : vector<32x128xf32>
    %96 = tpu.matmul %0, %95, %cst_50 {dimension_numbers = #tpu.dot_dimension_numbers<[1], [0], [0], [1], [0, 0, 1, 1], [], []>} : vector<32x32xf32>, vector<32x128xf32>, vector<32x128xf32> -> vector<32x128xf32>
    %cst_51 = arith.constant 2.000000e+00 : f32
    %97 = vector.broadcast %cst_51 : f32 to vector<32x128xf32>
    %98 = arith.mulf %97, %96 : vector<32x128xf32>
    %99 = arith.subf %98, %91 : vector<32x128xf32>
    %100 = vector.extract_strided_slice %92 {offsets = [0, 0, 0], sizes = [1, 128, 128], strides = [1, 1, 1]} : vector<3x128x128xf32> to vector<1x128x128xf32>
    %101 = vector.shape_cast %100 : vector<1x128x128xf32> to vector<128x128xf32>
    %cst_52 = arith.constant dense<0.000000e+00> : vector<32x128xf32>
    %102 = tpu.matmul %91, %101, %cst_52 {dimension_numbers = #tpu.dot_dimension_numbers<[1], [0], [0], [1], [0, 0, 1, 1], [], []>} : vector<32x128xf32>, vector<128x128xf32>, vector<32x128xf32> -> vector<32x128xf32>
    %103 = vector.extract_strided_slice %92 {offsets = [1, 0, 0], sizes = [1, 128, 128], strides = [1, 1, 1]} : vector<3x128x128xf32> to vector<1x128x128xf32>
    %104 = vector.shape_cast %103 : vector<1x128x128xf32> to vector<128x128xf32>
    %cst_53 = arith.constant dense<0.000000e+00> : vector<32x128xf32>
    %105 = tpu.matmul %95, %104, %cst_53 {dimension_numbers = #tpu.dot_dimension_numbers<[1], [0], [0], [1], [0, 0, 1, 1], [], []>} : vector<32x128xf32>, vector<128x128xf32>, vector<32x128xf32> -> vector<32x128xf32>
    %106 = arith.addf %102, %105 : vector<32x128xf32>
    %107 = vector.extract_strided_slice %92 {offsets = [2, 0, 0], sizes = [1, 128, 128], strides = [1, 1, 1]} : vector<3x128x128xf32> to vector<1x128x128xf32>
    %108 = vector.shape_cast %107 : vector<1x128x128xf32> to vector<128x128xf32>
    %cst_54 = arith.constant dense<0.000000e+00> : vector<32x128xf32>
    %109 = tpu.matmul %99, %108, %cst_54 {dimension_numbers = #tpu.dot_dimension_numbers<[1], [0], [0], [1], [0, 0, 1, 1], [], []>} : vector<32x128xf32>, vector<128x128xf32>, vector<32x128xf32> -> vector<32x128xf32>
    %110 = arith.addf %106, %109 : vector<32x128xf32>
    %cst_55 = arith.constant dense<0.000000e+00> : vector<128xf32>
    %111 = vector.multi_reduction <add>, %110, %cst_55 [0] : vector<32x128xf32> to vector<128xf32>
    %112 = vector.shape_cast %111 : vector<128xf32> to vector<1x128xf32>
    %cst_56 = arith.constant 3.125000e-02 : f32
    %113 = vector.broadcast %cst_56 : f32 to vector<1x128xf32>
    %114 = arith.mulf %112, %113 : vector<1x128xf32>
    %115 = arith.mulf %110, %110 : vector<32x128xf32>
    %cst_57 = arith.constant dense<0.000000e+00> : vector<128xf32>
    %116 = vector.multi_reduction <add>, %115, %cst_57 [0] : vector<32x128xf32> to vector<128xf32>
    %117 = vector.shape_cast %116 : vector<128xf32> to vector<1x128xf32>
    %cst_58 = arith.constant 3.125000e-02 : f32
    %118 = vector.broadcast %cst_58 : f32 to vector<1x128xf32>
    %119 = arith.mulf %117, %118 : vector<1x128xf32>
    %120 = arith.mulf %114, %114 : vector<1x128xf32>
    %121 = arith.subf %119, %120 : vector<1x128xf32>
    %cst_59 = arith.constant 9.99999974E-6 : f32
    %122 = vector.broadcast %cst_59 : f32 to vector<1x128xf32>
    %123 = arith.addf %121, %122 : vector<1x128xf32>
    %124 = math.rsqrt %123 : vector<1x128xf32>
    %125 = arith.mulf %93, %124 : vector<1x128xf32>
    %126 = arith.mulf %114, %125 : vector<1x128xf32>
    %127 = arith.subf %94, %126 : vector<1x128xf32>
    %128 = vector.broadcast %125 : vector<1x128xf32> to vector<32x128xf32>
    %129 = arith.mulf %110, %128 : vector<32x128xf32>
    %130 = vector.broadcast %127 : vector<1x128xf32> to vector<32x128xf32>
    %131 = arith.addf %129, %130 : vector<32x128xf32>
    %cst_60 = arith.constant 0.000000e+00 : f32
    %132 = vector.broadcast %cst_60 : f32 to vector<32x128xf32>
    %133 = arith.cmpf oge, %131, %132 : vector<32x128xf32>
    %cst_61 = arith.constant 0.00999999977 : f32
    %134 = vector.broadcast %cst_61 : f32 to vector<32x128xf32>
    %135 = arith.mulf %134, %131 : vector<32x128xf32>
    %136 = arith.select %133, %131, %135 : vector<32x128xi1>, vector<32x128xf32>
    %c0_62 = arith.constant 0 : index
    %c0_63 = arith.constant 0 : index
    %c0_64 = arith.constant 0 : index
    %137 = vector.load %arg11[%c0_62, %c0_63, %c0_64] : memref<3x128x32xf32, #tpu.memory_space<vmem>>, vector<3x128x32xf32>
    %c0_65 = arith.constant 0 : index
    %c0_66 = arith.constant 0 : index
    %138 = vector.load %arg12[%c0_65, %c0_66] : memref<1x32xf32, #tpu.memory_space<vmem>>, vector<1x32xf32>
    %c0_67 = arith.constant 0 : index
    %c0_68 = arith.constant 0 : index
    %139 = vector.load %arg13[%c0_67, %c0_68] : memref<1x32xf32, #tpu.memory_space<vmem>>, vector<1x32xf32>
    %cst_69 = arith.constant dense<0.000000e+00> : vector<32x128xf32>
    %140 = tpu.matmul %0, %136, %cst_69 {dimension_numbers = #tpu.dot_dimension_numbers<[1], [0], [0], [1], [0, 0, 1, 1], [], []>} : vector<32x32xf32>, vector<32x128xf32>, vector<32x128xf32> -> vector<32x128xf32>
    %cst_70 = arith.constant dense<0.000000e+00> : vector<32x128xf32>
    %141 = tpu.matmul %0, %140, %cst_70 {dimension_numbers = #tpu.dot_dimension_numbers<[1], [0], [0], [1], [0, 0, 1, 1], [], []>} : vector<32x32xf32>, vector<32x128xf32>, vector<32x128xf32> -> vector<32x128xf32>
    %cst_71 = arith.constant 2.000000e+00 : f32
    %142 = vector.broadcast %cst_71 : f32 to vector<32x128xf32>
    %143 = arith.mulf %142, %141 : vector<32x128xf32>
    %144 = arith.subf %143, %136 : vector<32x128xf32>
    %145 = vector.extract_strided_slice %137 {offsets = [0, 0, 0], sizes = [1, 128, 32], strides = [1, 1, 1]} : vector<3x128x32xf32> to vector<1x128x32xf32>
    %146 = vector.shape_cast %145 : vector<1x128x32xf32> to vector<128x32xf32>
    %cst_72 = arith.constant dense<0.000000e+00> : vector<32x32xf32>
    %147 = tpu.matmul %136, %146, %cst_72 {dimension_numbers = #tpu.dot_dimension_numbers<[1], [0], [0], [1], [0, 0, 1, 1], [], []>} : vector<32x128xf32>, vector<128x32xf32>, vector<32x32xf32> -> vector<32x32xf32>
    %148 = vector.extract_strided_slice %137 {offsets = [1, 0, 0], sizes = [1, 128, 32], strides = [1, 1, 1]} : vector<3x128x32xf32> to vector<1x128x32xf32>
    %149 = vector.shape_cast %148 : vector<1x128x32xf32> to vector<128x32xf32>
    %cst_73 = arith.constant dense<0.000000e+00> : vector<32x32xf32>
    %150 = tpu.matmul %140, %149, %cst_73 {dimension_numbers = #tpu.dot_dimension_numbers<[1], [0], [0], [1], [0, 0, 1, 1], [], []>} : vector<32x128xf32>, vector<128x32xf32>, vector<32x32xf32> -> vector<32x32xf32>
    %151 = arith.addf %147, %150 : vector<32x32xf32>
    %152 = vector.extract_strided_slice %137 {offsets = [2, 0, 0], sizes = [1, 128, 32], strides = [1, 1, 1]} : vector<3x128x32xf32> to vector<1x128x32xf32>
    %153 = vector.shape_cast %152 : vector<1x128x32xf32> to vector<128x32xf32>
    %cst_74 = arith.constant dense<0.000000e+00> : vector<32x32xf32>
    %154 = tpu.matmul %144, %153, %cst_74 {dimension_numbers = #tpu.dot_dimension_numbers<[1], [0], [0], [1], [0, 0, 1, 1], [], []>} : vector<32x128xf32>, vector<128x32xf32>, vector<32x32xf32> -> vector<32x32xf32>
    %155 = arith.addf %151, %154 : vector<32x32xf32>
    %cst_75 = arith.constant dense<0.000000e+00> : vector<32xf32>
    %156 = vector.multi_reduction <add>, %155, %cst_75 [0] : vector<32x32xf32> to vector<32xf32>
    %157 = vector.shape_cast %156 : vector<32xf32> to vector<1x32xf32>
    %cst_76 = arith.constant 3.125000e-02 : f32
    %158 = vector.broadcast %cst_76 : f32 to vector<1x32xf32>
    %159 = arith.mulf %157, %158 : vector<1x32xf32>
    %160 = arith.mulf %155, %155 : vector<32x32xf32>
    %cst_77 = arith.constant dense<0.000000e+00> : vector<32xf32>
    %161 = vector.multi_reduction <add>, %160, %cst_77 [0] : vector<32x32xf32> to vector<32xf32>
    %162 = vector.shape_cast %161 : vector<32xf32> to vector<1x32xf32>
    %cst_78 = arith.constant 3.125000e-02 : f32
    %163 = vector.broadcast %cst_78 : f32 to vector<1x32xf32>
    %164 = arith.mulf %162, %163 : vector<1x32xf32>
    %165 = arith.mulf %159, %159 : vector<1x32xf32>
    %166 = arith.subf %164, %165 : vector<1x32xf32>
    %cst_79 = arith.constant 9.99999974E-6 : f32
    %167 = vector.broadcast %cst_79 : f32 to vector<1x32xf32>
    %168 = arith.addf %166, %167 : vector<1x32xf32>
    %169 = math.rsqrt %168 : vector<1x32xf32>
    %170 = arith.mulf %138, %169 : vector<1x32xf32>
    %171 = arith.mulf %159, %170 : vector<1x32xf32>
    %172 = arith.subf %139, %171 : vector<1x32xf32>
    %173 = vector.broadcast %170 : vector<1x32xf32> to vector<32x32xf32>
    %174 = arith.mulf %155, %173 : vector<32x32xf32>
    %175 = vector.broadcast %172 : vector<1x32xf32> to vector<32x32xf32>
    %176 = arith.addf %174, %175 : vector<32x32xf32>
    %cst_80 = arith.constant 0.000000e+00 : f32
    %177 = vector.broadcast %cst_80 : f32 to vector<32x32xf32>
    %178 = arith.cmpf oge, %176, %177 : vector<32x32xf32>
    %cst_81 = arith.constant 0.00999999977 : f32
    %179 = vector.broadcast %cst_81 : f32 to vector<32x32xf32>
    %180 = arith.mulf %179, %176 : vector<32x32xf32>
    %181 = arith.select %178, %176, %180 : vector<32x32xi1>, vector<32x32xf32>
    %c0_82 = arith.constant 0 : index
    %c0_83 = arith.constant 0 : index
    %c0_84 = arith.constant 0 : index
    %182 = vector.load %arg14[%c0_82, %c0_83, %c0_84] : memref<3x32x16xf32, #tpu.memory_space<vmem>>, vector<3x32x16xf32>
    %c0_85 = arith.constant 0 : index
    %c0_86 = arith.constant 0 : index
    %183 = vector.load %arg15[%c0_85, %c0_86] : memref<1x16xf32, #tpu.memory_space<vmem>>, vector<1x16xf32>
    %c0_87 = arith.constant 0 : index
    %c0_88 = arith.constant 0 : index
    %184 = vector.load %arg16[%c0_87, %c0_88] : memref<1x16xf32, #tpu.memory_space<vmem>>, vector<1x16xf32>
    %cst_89 = arith.constant dense<0.000000e+00> : vector<32x32xf32>
    %185 = tpu.matmul %0, %181, %cst_89 {dimension_numbers = #tpu.dot_dimension_numbers<[1], [0], [0], [1], [0, 0, 1, 1], [], []>} : vector<32x32xf32>, vector<32x32xf32>, vector<32x32xf32> -> vector<32x32xf32>
    %cst_90 = arith.constant dense<0.000000e+00> : vector<32x32xf32>
    %186 = tpu.matmul %0, %185, %cst_90 {dimension_numbers = #tpu.dot_dimension_numbers<[1], [0], [0], [1], [0, 0, 1, 1], [], []>} : vector<32x32xf32>, vector<32x32xf32>, vector<32x32xf32> -> vector<32x32xf32>
    %cst_91 = arith.constant 2.000000e+00 : f32
    %187 = vector.broadcast %cst_91 : f32 to vector<32x32xf32>
    %188 = arith.mulf %187, %186 : vector<32x32xf32>
    %189 = arith.subf %188, %181 : vector<32x32xf32>
    %190 = vector.extract_strided_slice %182 {offsets = [0, 0, 0], sizes = [1, 32, 16], strides = [1, 1, 1]} : vector<3x32x16xf32> to vector<1x32x16xf32>
    %191 = vector.shape_cast %190 : vector<1x32x16xf32> to vector<32x16xf32>
    %cst_92 = arith.constant dense<0.000000e+00> : vector<32x16xf32>
    %192 = tpu.matmul %181, %191, %cst_92 {dimension_numbers = #tpu.dot_dimension_numbers<[1], [0], [0], [1], [0, 0, 1, 1], [], []>} : vector<32x32xf32>, vector<32x16xf32>, vector<32x16xf32> -> vector<32x16xf32>
    %193 = vector.extract_strided_slice %182 {offsets = [1, 0, 0], sizes = [1, 32, 16], strides = [1, 1, 1]} : vector<3x32x16xf32> to vector<1x32x16xf32>
    %194 = vector.shape_cast %193 : vector<1x32x16xf32> to vector<32x16xf32>
    %cst_93 = arith.constant dense<0.000000e+00> : vector<32x16xf32>
    %195 = tpu.matmul %185, %194, %cst_93 {dimension_numbers = #tpu.dot_dimension_numbers<[1], [0], [0], [1], [0, 0, 1, 1], [], []>} : vector<32x32xf32>, vector<32x16xf32>, vector<32x16xf32> -> vector<32x16xf32>
    %196 = arith.addf %192, %195 : vector<32x16xf32>
    %197 = vector.extract_strided_slice %182 {offsets = [2, 0, 0], sizes = [1, 32, 16], strides = [1, 1, 1]} : vector<3x32x16xf32> to vector<1x32x16xf32>
    %198 = vector.shape_cast %197 : vector<1x32x16xf32> to vector<32x16xf32>
    %cst_94 = arith.constant dense<0.000000e+00> : vector<32x16xf32>
    %199 = tpu.matmul %189, %198, %cst_94 {dimension_numbers = #tpu.dot_dimension_numbers<[1], [0], [0], [1], [0, 0, 1, 1], [], []>} : vector<32x32xf32>, vector<32x16xf32>, vector<32x16xf32> -> vector<32x16xf32>
    %200 = arith.addf %196, %199 : vector<32x16xf32>
    %cst_95 = arith.constant dense<0.000000e+00> : vector<16xf32>
    %201 = vector.multi_reduction <add>, %200, %cst_95 [0] : vector<32x16xf32> to vector<16xf32>
    %202 = vector.shape_cast %201 : vector<16xf32> to vector<1x16xf32>
    %cst_96 = arith.constant 3.125000e-02 : f32
    %203 = vector.broadcast %cst_96 : f32 to vector<1x16xf32>
    %204 = arith.mulf %202, %203 : vector<1x16xf32>
    %205 = arith.mulf %200, %200 : vector<32x16xf32>
    %cst_97 = arith.constant dense<0.000000e+00> : vector<16xf32>
    %206 = vector.multi_reduction <add>, %205, %cst_97 [0] : vector<32x16xf32> to vector<16xf32>
    %207 = vector.shape_cast %206 : vector<16xf32> to vector<1x16xf32>
    %cst_98 = arith.constant 3.125000e-02 : f32
    %208 = vector.broadcast %cst_98 : f32 to vector<1x16xf32>
    %209 = arith.mulf %207, %208 : vector<1x16xf32>
    %210 = arith.mulf %204, %204 : vector<1x16xf32>
    %211 = arith.subf %209, %210 : vector<1x16xf32>
    %cst_99 = arith.constant 9.99999974E-6 : f32
    %212 = vector.broadcast %cst_99 : f32 to vector<1x16xf32>
    %213 = arith.addf %211, %212 : vector<1x16xf32>
    %214 = math.rsqrt %213 : vector<1x16xf32>
    %215 = arith.mulf %183, %214 : vector<1x16xf32>
    %216 = arith.mulf %204, %215 : vector<1x16xf32>
    %217 = arith.subf %184, %216 : vector<1x16xf32>
    %218 = vector.broadcast %215 : vector<1x16xf32> to vector<32x16xf32>
    %219 = arith.mulf %200, %218 : vector<32x16xf32>
    %220 = vector.broadcast %217 : vector<1x16xf32> to vector<32x16xf32>
    %221 = arith.addf %219, %220 : vector<32x16xf32>
    %cst_100 = arith.constant 0.000000e+00 : f32
    %222 = vector.broadcast %cst_100 : f32 to vector<32x16xf32>
    %223 = arith.cmpf oge, %221, %222 : vector<32x16xf32>
    %cst_101 = arith.constant 0.00999999977 : f32
    %224 = vector.broadcast %cst_101 : f32 to vector<32x16xf32>
    %225 = arith.mulf %224, %221 : vector<32x16xf32>
    %226 = arith.select %223, %221, %225 : vector<32x16xi1>, vector<32x16xf32>
    %c0_102 = arith.constant 0 : index
    %c0_103 = arith.constant 0 : index
    %227 = vector.load %arg17[%c0_102, %c0_103] : memref<16x128xf32, #tpu.memory_space<vmem>>, vector<16x128xf32>
    %cst_104 = arith.constant dense<0.000000e+00> : vector<32x128xf32>
    %228 = tpu.matmul %226, %227, %cst_104 {dimension_numbers = #tpu.dot_dimension_numbers<[1], [0], [0], [1], [0, 0, 1, 1], [], []>} : vector<32x16xf32>, vector<16x128xf32>, vector<32x128xf32> -> vector<32x128xf32>
    %c0_105 = arith.constant 0 : index
    %c0_106 = arith.constant 0 : index
    %229 = vector.load %arg18[%c0_105, %c0_106] : memref<1x128xf32, #tpu.memory_space<vmem>>, vector<1x128xf32>
    %230 = vector.broadcast %229 : vector<1x128xf32> to vector<32x128xf32>
    %231 = arith.addf %228, %230 : vector<32x128xf32>
    %c0_107 = arith.constant 0 : index
    %c0_108 = arith.constant 0 : index
    %232 = vector.load %arg19[%c0_107, %c0_108] : memref<32x128xf32, #tpu.memory_space<vmem>>, vector<32x128xf32>
    tpu.vector_store %arg19[%c0_107, %c0_108], %231 {strides = array<i32>} : memref<32x128xf32, #tpu.memory_space<vmem>>, vector<32x128xf32>,
    return
  }
}

</mosaic_0001>

<llo_original>
// kernel: chebmeshnet_forward.1
$region0: #{chebmeshnet_forward.1}
  #allocation0 [shape = 'u32[]', space=smem, size = 0x4, offset = 0x4, fixed_abs, tag = 'smem constant byte address 0x4 - core index']
  #allocation1 [shape = 'u32[72,128]{1,0:T(1,128)}', space=vmem, size = 0x9000, scoped, tag = 'internal scratch']
  %s0 = inlined_call_operand.vmem [shape: f32[32,32], index: 0, kind: input, shape index: {}]
  %s1 = inlined_call_operand.vmem [shape: f32[32,8], index: 1, kind: input, shape index: {}]
  %s2 = inlined_call_operand.vmem [shape: f32[3,8,32], index: 2, kind: input, shape index: {}]
  %s3 = inlined_call_operand.vmem [shape: f32[1,32], index: 3, kind: input, shape index: {}]
  %s4 = inlined_call_operand.vmem [shape: f32[1,32], index: 4, kind: input, shape index: {}]
  %s5 = inlined_call_operand.vmem [shape: f32[3,32,128], index: 5, kind: input, shape index: {}]
  %s6 = inlined_call_operand.vmem [shape: f32[1,128], index: 6, kind: input, shape index: {}]
  %s7 = inlined_call_operand.vmem [shape: f32[1,128], index: 7, kind: input, shape index: {}]
  %s8 = inlined_call_operand.vmem [shape: f32[3,128,128], index: 8, kind: input, shape index: {}]
  %s9 = inlined_call_operand.vmem [shape: f32[1,128], index: 9, kind: input, shape index: {}]
  %s10 = inlined_call_operand.vmem [shape: f32[1,128], index: 10, kind: input, shape index: {}]
  %s11 = inlined_call_operand.vmem [shape: f32[3,128,32], index: 11, kind: input, shape index: {}]
  %s12 = inlined_call_operand.vmem [shape: f32[1,32], index: 12, kind: input, shape index: {}]
  %s13 = inlined_call_operand.vmem [shape: f32[1,32], index: 13, kind: input, shape index: {}]
  %s14 = inlined_call_operand.vmem [shape: f32[3,32,16], index: 14, kind: input, shape index: {}]
  %s15 = inlined_call_operand.vmem [shape: f32[1,16], index: 15, kind: input, shape index: {}]
  %s16 = inlined_call_operand.vmem [shape: f32[1,16], index: 16, kind: input, shape index: {}]
  %s17 = inlined_call_operand.vmem [shape: f32[16,128], index: 17, kind: input, shape index: {}]
  %s18 = inlined_call_operand.vmem [shape: f32[1,128], index: 18, kind: input, shape index: {}]
  %s19 = inlined_call_operand.vmem [shape: f32[32,128], index: 19, kind: output, shape index: {}]
  %s20 = sld [smem:[#allocation0]]
  $region86: #{chebmeshnet_forward.1} parent=0
    _
  %s22 = ssub.s32 1, %s20
  %s23 = scalar_select 0, %s22, %s20
  // Predicated region
  $region2: #{chebmeshnet_forward.1} parent=0 // pred_check
    _
  $region3: #{chebmeshnet_forward.1} parent=0 // pred_check_branch
    %25 = sbr.rel (0) target = $region5
  $region4: #{chebmeshnet_forward.1} parent=0 // pred_region
    _
  $region5: #{chebmeshnet_forward.1} parent=0 // pred_fallthru
    _
  // Predicated region
  $region6: #{chebmeshnet_forward.1} parent=0 // pred_check
    _
  $region7: #{chebmeshnet_forward.1} parent=0 // pred_check_branch
    %27 = sbr.rel (0) target = $region9
  $region8: #{chebmeshnet_forward.1} parent=0 // pred_region
    _
  $region9: #{chebmeshnet_forward.1} parent=0 // pred_fallthru
    _
  // Predicated region
  $region10: #{chebmeshnet_forward.1} parent=0 // pred_check
    _
  $region11: #{chebmeshnet_forward.1} parent=0 // pred_check_branch
    %29 = sbr.rel (0) target = $region13
  $region12: #{chebmeshnet_forward.1} parent=0 // pred_region
    _
  $region13: #{chebmeshnet_forward.1} parent=0 // pred_fallthru
    _
  // Predicated region
  $region14: #{chebmeshnet_forward.1} parent=0 // pred_check
    _
  $region15: #{chebmeshnet_forward.1} parent=0 // pred_check_branch
    %31 = sbr.rel (0) target = $region17
  $region16: #{chebmeshnet_forward.1} parent=0 // pred_region
    _
  $region17: #{chebmeshnet_forward.1} parent=0 // pred_fallthru
    _
  // Predicated region
  $region18: #{chebmeshnet_forward.1} parent=0 // pred_check
    _
  $region19: #{chebmeshnet_forward.1} parent=0 // pred_check_branch
    %33 = sbr.rel (0) target = $region21
  $region20: #{chebmeshnet_forward.1} parent=0 // pred_region
    _
  $region21: #{chebmeshnet_forward.1} parent=0 // pred_fallthru
    _
  // Predicated region
  $region22: #{chebmeshnet_forward.1} parent=0 // pred_check
    _
  $region23: #{chebmeshnet_forward.1} parent=0 // pred_check_branch
    %35 = sbr.rel (0) target = $region25
  $region24: #{chebmeshnet_forward.1} parent=0 // pred_region
    _
  $region25: #{chebmeshnet_forward.1} parent=0 // pred_fallthru
    _
  // Predicated region
  $region26: #{chebmeshnet_forward.1} parent=0 // pred_check
    _
  $region27: #{chebmeshnet_forward.1} parent=0 // pred_check_branch
    %37 = sbr.rel (0) target = $region29
  $region28: #{chebmeshnet_forward.1} parent=0 // pred_region
    _
  $region29: #{chebmeshnet_forward.1} parent=0 // pred_fallthru
    _
  // Predicated region
  $region30: #{chebmeshnet_forward.1} parent=0 // pred_check
    _
  $region31: #{chebmeshnet_forward.1} parent=0 // pred_check_branch
    %39 = sbr.rel (0) target = $region33
  $region32: #{chebmeshnet_forward.1} parent=0 // pred_region
    _
  $region33: #{chebmeshnet_forward.1} parent=0 // pred_fallthru
    _
  // Predicated region
  $region34: #{chebmeshnet_forward.1} parent=0 // pred_check
    _
  $region35: #{chebmeshnet_forward.1} parent=0 // pred_check_branch
    %41 = sbr.rel (0) target = $region37
  $region36: #{chebmeshnet_forward.1} parent=0 // pred_region
    _
  $region37: #{chebmeshnet_forward.1} parent=0 // pred_fallthru
    _
  // Predicated region
  $region38: #{chebmeshnet_forward.1} parent=0 // pred_check
    _
  $region39: #{chebmeshnet_forward.1} parent=0 // pred_check_branch
    %43 = sbr.rel (0) target = $region41
  $region40: #{chebmeshnet_forward.1} parent=0 // pred_region
    _
  $region41: #{chebmeshnet_forward.1} parent=0 // pred_fallthru
    _
  // Predicated region
  $region42: #{chebmeshnet_forward.1} parent=0 // pred_check
    _
  $region43: #{chebmeshnet_forward.1} parent=0 // pred_check_branch
    %45 = sbr.rel (0) target = $region45
  $region44: #{chebmeshnet_forward.1} parent=0 // pred_region
    _
  $region45: #{chebmeshnet_forward.1} parent=0 // pred_fallthru
    _
  // Predicated region
  $region46: #{chebmeshnet_forward.1} parent=0 // pred_check
    _
  $region47: #{chebmeshnet_forward.1} parent=0 // pred_check_branch
    %47 = sbr.rel (0) target = $region49
  $region48: #{chebmeshnet_forward.1} parent=0 // pred_region
    _
  $region49: #{chebmeshnet_forward.1} parent=0 // pred_fallthru
    _
  // Predicated region
  $region50: #{chebmeshnet_forward.1} parent=0 // pred_check
    _
  $region51: #{chebmeshnet_forward.1} parent=0 // pred_check_branch
    %49 = sbr.rel (0) target = $region53
  $region52: #{chebmeshnet_forward.1} parent=0 // pred_region
    _
  $region53: #{chebmeshnet_forward.1} parent=0 // pred_fallthru
    _
  // Predicated region
  $region54: #{chebmeshnet_forward.1} parent=0 // pred_check
    _
  $region55: #{chebmeshnet_forward.1} parent=0 // pred_check_branch
    %51 = sbr.rel (0) target = $region57
  $region56: #{chebmeshnet_forward.1} parent=0 // pred_region
    _
  $region57: #{chebmeshnet_forward.1} parent=0 // pred_fallthru
    _
  // Predicated region
  $region58: #{chebmeshnet_forward.1} parent=0 // pred_check
    _
  $region59: #{chebmeshnet_forward.1} parent=0 // pred_check_branch
    %53 = sbr.rel (0) target = $region61
  $region60: #{chebmeshnet_forward.1} parent=0 // pred_region
    _
  $region61: #{chebmeshnet_forward.1} parent=0 // pred_fallthru
    _
  // Predicated region
  $region62: #{chebmeshnet_forward.1} parent=0 // pred_check
    _
  $region63: #{chebmeshnet_forward.1} parent=0 // pred_check_branch
    %55 = sbr.rel (0) target = $region65
  $region64: #{chebmeshnet_forward.1} parent=0 // pred_region
    _
  $region65: #{chebmeshnet_forward.1} parent=0 // pred_fallthru
    _
  // Predicated region
  $region66: #{chebmeshnet_forward.1} parent=0 // pred_check
    _
  $region67: #{chebmeshnet_forward.1} parent=0 // pred_check_branch
    %57 = sbr.rel (0) target = $region69
  $region68: #{chebmeshnet_forward.1} parent=0 // pred_region
    _
  $region69: #{chebmeshnet_forward.1} parent=0 // pred_fallthru
    _
  // Predicated region
  $region70: #{chebmeshnet_forward.1} parent=0 // pred_check
    _
  $region71: #{chebmeshnet_forward.1} parent=0 // pred_check_branch
    %59 = sbr.rel (0) target = $region73
  $region72: #{chebmeshnet_forward.1} parent=0 // pred_region
    _
  $region73: #{chebmeshnet_forward.1} parent=0 // pred_fallthru
    _
  // Predicated region
  $region74: #{chebmeshnet_forward.1} parent=0 // pred_check
    _
  $region75: #{chebmeshnet_forward.1} parent=0 // pred_check_branch
    %61 = sbr.rel (0) target = $region77
  $region76: #{chebmeshnet_forward.1} parent=0 // pred_region
    _
  $region77: #{chebmeshnet_forward.1} parent=0 // pred_fallthru
    _
  %v62 = vld [vmem:[%s0] sm:$0xff]
  %v63 = vld [vmem:[%s0 + $0x8] sm:$0xff]
  %v64 = vld [vmem:[%s0 + $0x10] sm:$0xff]
  %v65 = vld [vmem:[%s0 + $0x18] sm:$0xff]
  %v66 = vld [vmem:[%s1] sm:$0xff]
  %v67 = vld [vmem:[%s1 + $0x8] sm:$0xff]
  %v68 = vld [vmem:[%s1 + $0x10] sm:$0xff]
  %v69 = vld [vmem:[%s1 + $0x18] sm:$0xff]
  %v70 = vld [vmem:[%s2] sm:$0xff]
  %v71 = vld [vmem:[%s2 + $0x8] sm:$0xff]
  %v72 = vld [vmem:[%s2 + $0x10] sm:$0xff]
  %v73 = vld [vmem:[%s3] sm:$0x1]
  %v74 = vld [vmem:[%s4] sm:$0x1]
  %vm75 = vcmask 261120
  %v77 = vsel %vm75, %v62, 0
  %v80 = vsel %vm75, %v63, 0
  %v83 = vsel %vm75, %v64, 0
  %v86 = vsel %vm75, %v65, 0
  %88 = vmatpush.msra.mxu0 0.0
  %89 = vmatpush.msra.mxu0 0.0
  %90 = vmatpush.msra.mxu0 0.0
  %91 = vmatpush.msra.mxu0 0.0
  %92 = vmatpush.msra.mxu0 0.0
  %93 = vmatpush.msra.mxu0 0.0
  %94 = vmatpush.msra.mxu0 0.0
  %95 = vmatpush.msra.mxu0 0.0
  %96 = vmatpush.msra.mxu0 0.0
  %97 = vmatpush.msra.mxu0 0.0
  %98 = vmatpush.msra.mxu0 0.0
  %99 = vmatpush.msra.mxu0 0.0
  %100 = vmatpush.msra.mxu0 %v69
  %101 = vmatpush.msra.mxu0 %v68
  %102 = vmatpush.msra.mxu0 %v67
  %103 = vmatpush.msra.mxu0 %v66
  %104 = vmatmul.f32.gmra.mxu0 %v77
  %v105 = vpop.f32.mrf.mxu0
  %v106 = vadd.f32 0.0, %v105
  %107 = vmatmul.f32.gmra.mxu0 %v80
  %v108 = vpop.f32.mrf.mxu0
  %v109 = vadd.f32 0.0, %v108
  %110 = vmatmul.f32.gmra.mxu0 %v83
  %v111 = vpop.f32.mrf.mxu0
  %v112 = vadd.f32 0.0, %v111
  %113 = vmatmul.f32.gmra.mxu0 %v86
  %v114 = vpop.f32.mrf.mxu0
  %v115 = vadd.f32 0.0, %v114
  %116 = vdwg.mxu0
  %117 = vmatpush.msra.mxu0 0.0
  %118 = vmatpush.msra.mxu0 0.0
  %119 = vmatpush.msra.mxu0 0.0
  %120 = vmatpush.msra.mxu0 0.0
  %121 = vmatpush.msra.mxu0 0.0
  %122 = vmatpush.msra.mxu0 0.0
  %123 = vmatpush.msra.mxu0 0.0
  %124 = vmatpush.msra.mxu0 0.0
  %125 = vmatpush.msra.mxu0 0.0
  %126 = vmatpush.msra.mxu0 0.0
  %127 = vmatpush.msra.mxu0 0.0
  %128 = vmatpush.msra.mxu0 0.0
  %129 = vmatpush.msra.mxu0 %v115
  %130 = vmatpush.msra.mxu0 %v112
  %131 = vmatpush.msra.mxu0 %v109
  %132 = vmatpush.msra.mxu0 %v106
  %133 = vmatmul.f32.gmra.mxu0 %v77
  %v134 = vpop.f32.mrf.mxu0
  %v135 = vadd.f32 0.0, %v134
  %136 = vmatmul.f32.gmra.mxu0 %v80
  %v137 = vpop.f32.mrf.mxu0
  %v138 = vadd.f32 0.0, %v137
  %139 = vmatmul.f32.gmra.mxu0 %v83
  %v140 = vpop.f32.mrf.mxu0
  %v141 = vadd.f32 0.0, %v140
  %142 = vmatmul.f32.gmra.mxu0 %v86
  %v143 = vpop.f32.mrf.mxu0
  %v144 = vadd.f32 0.0, %v143
  %145 = vdwg.mxu0
  %v146 = vmul.f32 %v135, 2.0
  %v147 = vmul.f32 %v138, 2.0
  %v148 = vmul.f32 %v141, 2.0
  %v149 = vmul.f32 %v144, 2.0
  %v150 = vsub.f32 %v146, %v66
  %v151 = vsub.f32 %v147, %v67
  %v152 = vsub.f32 %v148, %v68
  %v153 = vsub.f32 %v149, %v69
  %vm154 = vcmask 64512
  %v156 = vsel %vm154, %v106, 0
  %v159 = vsel %vm154, %v109, 0
  %v162 = vsel %vm154, %v112, 0
  %v165 = vsel %vm154, %v115, 0
  %167 = vmatpush.msra.mxu0 0.0
  %168 = vmatpush.msra.mxu0 0.0
  %169 = vmatpush.msra.mxu0 0.0
  %170 = vmatpush.msra.mxu0 0.0
  %171 = vmatpush.msra.mxu0 0.0
  %172 = vmatpush.msra.mxu0 0.0
  %173 = vmatpush.msra.mxu0 0.0
  %174 = vmatpush.msra.mxu0 0.0
  %175 = vmatpush.msra.mxu0 0.0
  %176 = vmatpush.msra.mxu0 0.0
  %177 = vmatpush.msra.mxu0 0.0
  %178 = vmatpush.msra.mxu0 0.0
  %179 = vmatpush.msra.mxu0 0.0
  %180 = vmatpush.msra.mxu0 0.0
  %181 = vmatpush.msra.mxu0 0.0
  %182 = vmatpush.msra.mxu0 %v71
  %183 = vmatmul.f32.gmra.mxu0 %v156
  %v184 = vpop.f32.mrf.mxu0
  %v185 = vadd.f32 0.0, %v184
  %186 = vmatmul.f32.gmra.mxu0 %v159
  %v187 = vpop.f32.mrf.mxu0
  %v188 = vadd.f32 0.0, %v187
  %189 = vmatmul.f32.gmra.mxu0 %v162
  %v190 = vpop.f32.mrf.mxu0
  %v191 = vadd.f32 0.0, %v190
  %192 = vmatmul.f32.gmra.mxu0 %v165
  %v193 = vpop.f32.mrf.mxu0
  %v194 = vadd.f32 0.0, %v193
  %195 = vdwg.mxu0
  %v197 = vsel %vm154, %v66, 0
  %v200 = vsel %vm154, %v67, 0
  %v203 = vsel %vm154, %v68, 0
  %v206 = vsel %vm154, %v69, 0
  %208 = vmatpush.msra.mxu0 0.0
  %209 = vmatpush.msra.mxu0 0.0
  %210 = vmatpush.msra.mxu0 0.0
  %211 = vmatpush.msra.mxu0 0.0
  %212 = vmatpush.msra.mxu0 0.0
  %213 = vmatpush.msra.mxu0 0.0
  %214 = vmatpush.msra.mxu0 0.0
  %215 = vmatpush.msra.mxu0 0.0
  %216 = vmatpush.msra.mxu0 0.0
  %217 = vmatpush.msra.mxu0 0.0
  %218 = vmatpush.msra.mxu0 0.0
  %219 = vmatpush.msra.mxu0 0.0
  %220 = vmatpush.msra.mxu0 0.0
  %221 = vmatpush.msra.mxu0 0.0
  %222 = vmatpush.msra.mxu0 0.0
  %223 = vmatpush.msra.mxu0 %v70
  %224 = vmatmul.f32.gmra.mxu0 %v197
  %v225 = vpop.f32.mrf.mxu0
  %v226 = vadd.f32 %v185, %v225
  %227 = vmatmul.f32.gmra.mxu0 %v200
  %v228 = vpop.f32.mrf.mxu0
  %v229 = vadd.f32 %v188, %v228
  %230 = vmatmul.f32.gmra.mxu0 %v203
  %v231 = vpop.f32.mrf.mxu0
  %v232 = vadd.f32 %v191, %v231
  %233 = vmatmul.f32.gmra.mxu0 %v206
  %v234 = vpop.f32.mrf.mxu0
  %v235 = vadd.f32 %v194, %v234
  %236 = vdwg.mxu0
  %v238 = vsel %vm154, %v150, 0
  %v241 = vsel %vm154, %v151, 0
  %v244 = vsel %vm154, %v152, 0
  %v247 = vsel %vm154, %v153, 0
  %249 = vmatpush.msra.mxu0 0.0
  %250 = vmatpush.msra.mxu0 0.0
  %251 = vmatpush.msra.mxu0 0.0
  %252 = vmatpush.msra.mxu0 0.0
  %253 = vmatpush.msra.mxu0 0.0
  %254 = vmatpush.msra.mxu0 0.0
  %255 = vmatpush.msra.mxu0 0.0
  %256 = vmatpush.msra.mxu0 0.0
  %257 = vmatpush.msra.mxu0 0.0
  %258 = vmatpush.msra.mxu0 0.0
  %259 = vmatpush.msra.mxu0 0.0
  %260 = vmatpush.msra.mxu0 0.0
  %261 = vmatpush.msra.mxu0 0.0
  %262 = vmatpush.msra.mxu0 0.0
  %263 = vmatpush.msra.mxu0 0.0
  %264 = vmatpush.msra.mxu0 %v72
  %265 = vmatmul.f32.gmra.mxu0 %v238
  %v266 = vpop.f32.mrf.mxu0
  %v267 = vadd.f32 0.0, %v266
  %268 = vmatmul.f32.gmra.mxu0 %v241
  %v269 = vpop.f32.mrf.mxu0
  %v270 = vadd.f32 0.0, %v269
  %271 = vmatmul.f32.gmra.mxu0 %v244
  %v272 = vpop.f32.mrf.mxu0
  %v273 = vadd.f32 0.0, %v272
  %274 = vmatmul.f32.gmra.mxu0 %v247
  %v275 = vpop.f32.mrf.mxu0
  %v276 = vadd.f32 0.0, %v275
  %277 = vdwg.mxu0
  %v278 = vadd.f32 %v226, %v267
  %v279 = vadd.f32 %v229, %v270
  %v280 = vadd.f32 %v232, %v273
  %v281 = vadd.f32 %v235, %v276
  %v282 = vsel %vm75, %v278, 0.0
  %v283 = vsel %vm75, %v279, 0.0
  %v284 = vadd.f32 %v282, %v283
  %v285 = vsel %vm75, %v280, 0.0
  %v286 = vadd.f32 %v284, %v285
  %v287 = vsel %vm75, %v281, 0.0
  %v288 = vadd.f32 %v286, %v287
  %v289 = vrot.slane %v288, 4
  %v290 = vadd.f32 %v288, %v289
  %v291 = vrot.slane %v290, 2
  %v292 = vadd.f32 %v290, %v291
  %v293 = vrot.slane %v292, 1
  %v294 = vadd.f32 %v292, %v293
  %v295 = vmul.f32 %v294, 0.03125
  %v296 = vmul.f32 %v278, %v278
  %v297 = vmul.f32 %v279, %v279
  %v298 = vmul.f32 %v280, %v280
  %v299 = vmul.f32 %v281, %v281
  %v300 = vsel %vm75, %v296, 0.0
  %v301 = vsel %vm75, %v297, 0.0
  %v302 = vadd.f32 %v300, %v301
  %v303 = vsel %vm75, %v298, 0.0
  %v304 = vadd.f32 %v302, %v303
  %v305 = vsel %vm75, %v299, 0.0
  %v306 = vadd.f32 %v304, %v305
  %v307 = vrot.slane %v306, 4
  %v308 = vadd.f32 %v306, %v307
  %v309 = vrot.slane %v308, 2
  %v310 = vadd.f32 %v308, %v309
  %v311 = vrot.slane %v310, 1
  %v312 = vadd.f32 %v310, %v311
  %v313 = vmul.f32 %v312, 0.03125
  %v314 = vmul.f32 %v295, %v295
  %v315 = vsub.f32 %v313, %v314
  %v316 = vadd.f32 %v315, 1e-05
  %v317 = vrsqrt.pop %v316
  %v318 = vmul.f32 %v317, %v316
  %v319 = vmul.f32 %v318, %v317
  %v320 = vmul.f32 0.5, %v319
  %v321 = vsub.f32 1.5, %v320
  %v322 = vmul.f32 %v317, %v321
  %vm323 = vweird.f32 %v316
  %vm324 = vweird.f32 %v317
  %vm325 = vmor %vm323, %vm324
  %v326 = vsel %vm325, %v317, %v322
  %v327 = vmul.f32 %v73, %v326
  %v328 = vmul.f32 %v295, %v327
  %v329 = vsub.f32 %v74, %v328
  %v331 = vperm.slane %v327, 0
  %v333 = vmul.f32 %v278, %v331
  %v334 = vmul.f32 %v279, %v331
  %v335 = vmul.f32 %v280, %v331
  %v336 = vmul.f32 %v281, %v331
  %v338 = vperm.slane %v329, 0
  %v340 = vadd.f32 %v333, %v338
  %v341 = vadd.f32 %v334, %v338
  %v342 = vadd.f32 %v335, %v338
  %v343 = vadd.f32 %v336, %v338
  %vm344 = vcmp.ge.f32.partialorder %v340, 0.0
  %vm345 = vcmp.ge.f32.partialorder %v341, 0.0
  %vm346 = vcmp.ge.f32.partialorder %v342, 0.0
  %vm347 = vcmp.ge.f32.partialorder %v343, 0.0
  %v348 = vmul.f32 %v340, 0.01
  %v349 = vmul.f32 %v341, 0.01
  %v350 = vmul.f32 %v342, 0.01
  %v351 = vmul.f32 %v343, 0.01
  %v352 = vsel %vm344, %v340, %v348
  %v353 = vsel %vm345, %v341, %v349
  %v354 = vsel %vm346, %v342, %v350
  %v355 = vsel %vm347, %v343, %v351
  %v356 = vld [vmem:[%s5] sm:$0xff]
  %v357 = vld [vmem:[%s5 + $0x8] sm:$0xff]
  %v358 = vld [vmem:[%s5 + $0x10] sm:$0xff]
  %v359 = vld [vmem:[%s5 + $0x18] sm:$0xff]
  %v360 = vld [vmem:[%s5 + $0x20] sm:$0xff]
  %v361 = vld [vmem:[%s5 + $0x28] sm:$0xff]
  %v362 = vld [vmem:[%s5 + $0x30] sm:$0xff]
  %v363 = vld [vmem:[%s5 + $0x38] sm:$0xff]
  %v364 = vld [vmem:[%s5 + $0x40] sm:$0xff]
  %v365 = vld [vmem:[%s5 + $0x48] sm:$0xff]
  %v366 = vld [vmem:[%s5 + $0x50] sm:$0xff]
  %v367 = vld [vmem:[%s5 + $0x58] sm:$0xff]
  %v368 = vld [vmem:[%s6] sm:$0x1]
  %v369 = vld [vmem:[%s7] sm:$0x1]
  %370 = vmatpush.msra.mxu0 0.0
  %371 = vmatpush.msra.mxu0 0.0
  %372 = vmatpush.msra.mxu0 0.0
  %373 = vmatpush.msra.mxu0 0.0
  %374 = vmatpush.msra.mxu0 0.0
  %375 = vmatpush.msra.mxu0 0.0
  %376 = vmatpush.msra.mxu0 0.0
  %377 = vmatpush.msra.mxu0 0.0
  %378 = vmatpush.msra.mxu0 0.0
  %379 = vmatpush.msra.mxu0 0.0
  %380 = vmatpush.msra.mxu0 0.0
  %381 = vmatpush.msra.mxu0 0.0
  %382 = vmatpush.msra.mxu0 %v355
  %383 = vmatpush.msra.mxu0 %v354
  %384 = vmatpush.msra.mxu0 %v353
  %385 = vmatpush.msra.mxu0 %v352
  %386 = vmatmul.f32.gmra.mxu0 %v77
  %v387 = vpop.f32.mrf.mxu0
  %v388 = vadd.f32 0.0, %v387
  %389 = vmatmul.f32.gmra.mxu0 %v80
  %v390 = vpop.f32.mrf.mxu0
  %v391 = vadd.f32 0.0, %v390
  %392 = vmatmul.f32.gmra.mxu0 %v83
  %v393 = vpop.f32.mrf.mxu0
  %v394 = vadd.f32 0.0, %v393
  %395 = vmatmul.f32.gmra.mxu0 %v86
  %v396 = vpop.f32.mrf.mxu0
  %v397 = vadd.f32 0.0, %v396
  %398 = vdwg.mxu0
  %399 = vmatpush.msra.mxu0 0.0
  %400 = vmatpush.msra.mxu0 0.0
  %401 = vmatpush.msra.mxu0 0.0
  %402 = vmatpush.msra.mxu0 0.0
  %403 = vmatpush.msra.mxu0 0.0
  %404 = vmatpush.msra.mxu0 0.0
  %405 = vmatpush.msra.mxu0 0.0
  %406 = vmatpush.msra.mxu0 0.0
  %407 = vmatpush.msra.mxu0 0.0
  %408 = vmatpush.msra.mxu0 0.0
  %409 = vmatpush.msra.mxu0 0.0
  %410 = vmatpush.msra.mxu0 0.0
  %411 = vmatpush.msra.mxu0 %v397
  %412 = vmatpush.msra.mxu0 %v394
  %413 = vmatpush.msra.mxu0 %v391
  %414 = vmatpush.msra.mxu0 %v388
  %415 = vmatmul.f32.gmra.mxu0 %v77
  %v416 = vpop.f32.mrf.mxu0
  %v417 = vadd.f32 0.0, %v416
  %418 = vmatmul.f32.gmra.mxu0 %v80
  %v419 = vpop.f32.mrf.mxu0
  %v420 = vadd.f32 0.0, %v419
  %421 = vmatmul.f32.gmra.mxu0 %v83
  %v422 = vpop.f32.mrf.mxu0
  %v423 = vadd.f32 0.0, %v422
  %424 = vmatmul.f32.gmra.mxu0 %v86
  %v425 = vpop.f32.mrf.mxu0
  %v426 = vadd.f32 0.0, %v425
  %427 = vdwg.mxu0
  %v428 = vmul.f32 %v417, 2.0
  %v429 = vmul.f32 %v420, 2.0
  %v430 = vmul.f32 %v423, 2.0
  %v431 = vmul.f32 %v426, 2.0
  %v432 = vsub.f32 %v428, %v352
  %v433 = vsub.f32 %v429, %v353
  %v434 = vsub.f32 %v430, %v354
  %v435 = vsub.f32 %v431, %v355
  %v437 = vsel %vm75, %v388, 0
  %v440 = vsel %vm75, %v391, 0
  %v443 = vsel %vm75, %v394, 0
  %v446 = vsel %vm75, %v397, 0
  %448 = vmatpush.msra.mxu0 0.0
  %449 = vmatpush.msra.mxu0 0.0
  %450 = vmatpush.msra.mxu0 0.0
  %451 = vmatpush.msra.mxu0 0.0
  %452 = vmatpush.msra.mxu0 0.0
  %453 = vmatpush.msra.mxu0 0.0
  %454 = vmatpush.msra.mxu0 0.0
  %455 = vmatpush.msra.mxu0 0.0
  %456 = vmatpush.msra.mxu0 0.0
  %457 = vmatpush.msra.mxu0 0.0
  %458 = vmatpush.msra.mxu0 0.0
  %459 = vmatpush.msra.mxu0 0.0
  %460 = vmatpush.msra.mxu0 %v363
  %461 = vmatpush.msra.mxu0 %v362
  %462 = vmatpush.msra.mxu0 %v361
  %463 = vmatpush.msra.mxu0 %v360
  %464 = vmatmul.f32.gmra.mxu0 %v437
  %v465 = vpop.f32.mrf.mxu0
  %v466 = vadd.f32 0.0, %v465
  %467 = vmatmul.f32.gmra.mxu0 %v440
  %v468 = vpop.f32.mrf.mxu0
  %v469 = vadd.f32 0.0, %v468
  %470 = vmatmul.f32.gmra.mxu0 %v443
  %v471 = vpop.f32.mrf.mxu0
  %v472 = vadd.f32 0.0, %v471
  %473 = vmatmul.f32.gmra.mxu0 %v446
  %v474 = vpop.f32.mrf.mxu0
  %v475 = vadd.f32 0.0, %v474
  %476 = vdwg.mxu0
  %v478 = vsel %vm75, %v352, 0
  %v481 = vsel %vm75, %v353, 0
  %v484 = vsel %vm75, %v354, 0
  %v487 = vsel %vm75, %v355, 0
  %489 = vmatpush.msra.mxu0 0.0
  %490 = vmatpush.msra.mxu0 0.0
  %491 = vmatpush.msra.mxu0 0.0
  %492 = vmatpush.msra.mxu0 0.0
  %493 = vmatpush.msra.mxu0 0.0
  %494 = vmatpush.msra.mxu0 0.0
  %495 = vmatpush.msra.mxu0 0.0
  %496 = vmatpush.msra.mxu0 0.0
  %497 = vmatpush.msra.mxu0 0.0
  %498 = vmatpush.msra.mxu0 0.0
  %499 = vmatpush.msra.mxu0 0.0
  %500 = vmatpush.msra.mxu0 0.0
  %501 = vmatpush.msra.mxu0 %v359
  %502 = vmatpush.msra.mxu0 %v358
  %503 = vmatpush.msra.mxu0 %v357
  %504 = vmatpush.msra.mxu0 %v356
  %505 = vmatmul.f32.gmra.mxu0 %v478
  %v506 = vpop.f32.mrf.mxu0
  %v507 = vadd.f32 %v466, %v506
  %508 = vmatmul.f32.gmra.mxu0 %v481
  %v509 = vpop.f32.mrf.mxu0
  %v510 = vadd.f32 %v469, %v509
  %511 = vmatmul.f32.gmra.mxu0 %v484
  %v512 = vpop.f32.mrf.mxu0
  %v513 = vadd.f32 %v472, %v512
  %514 = vmatmul.f32.gmra.mxu0 %v487
  %v515 = vpop.f32.mrf.mxu0
  %v516 = vadd.f32 %v475, %v515
  %517 = vdwg.mxu0
  %v519 = vsel %vm75, %v432, 0
  %v522 = vsel %vm75, %v433, 0
  %v525 = vsel %vm75, %v434, 0
  %v528 = vsel %vm75, %v435, 0
  %530 = vmatpush.msra.mxu0 0.0
  %531 = vmatpush.msra.mxu0 0.0
  %532 = vmatpush.msra.mxu0 0.0
  %533 = vmatpush.msra.mxu0 0.0
  %534 = vmatpush.msra.mxu0 0.0
  %535 = vmatpush.msra.mxu0 0.0
  %536 = vmatpush.msra.mxu0 0.0
  %537 = vmatpush.msra.mxu0 0.0
  %538 = vmatpush.msra.mxu0 0.0
  %539 = vmatpush.msra.mxu0 0.0
  %540 = vmatpush.msra.mxu0 0.0
  %541 = vmatpush.msra.mxu0 0.0
  %542 = vmatpush.msra.mxu0 %v367
  %543 = vmatpush.msra.mxu0 %v366
  %544 = vmatpush.msra.mxu0 %v365
  %545 = vmatpush.msra.mxu0 %v364
  %546 = vmatmul.f32.gmra.mxu0 %v519
  %v547 = vpop.f32.mrf.mxu0
  %v548 = vadd.f32 0.0, %v547
  %549 = vmatmul.f32.gmra.mxu0 %v522
  %v550 = vpop.f32.mrf.mxu0
  %v551 = vadd.f32 0.0, %v550
  %552 = vmatmul.f32.gmra.mxu0 %v525
  %v553 = vpop.f32.mrf.mxu0
  %v554 = vadd.f32 0.0, %v553
  %555 = vmatmul.f32.gmra.mxu0 %v528
  %v556 = vpop.f32.mrf.mxu0
  %v557 = vadd.f32 0.0, %v556
  %558 = vdwg.mxu0
  %v559 = vadd.f32 %v507, %v548
  %v560 = vadd.f32 %v510, %v551
  %v561 = vadd.f32 %v513, %v554
  %v562 = vadd.f32 %v516, %v557
  %v563 = vadd.f32 %v559, %v560
  %v564 = vadd.f32 %v563, %v561
  %v565 = vadd.f32 %v564, %v562
  %v566 = vrot.slane %v565, 4
  %v567 = vadd.f32 %v565, %v566
  %v568 = vrot.slane %v567, 2
  %v569 = vadd.f32 %v567, %v568
  %v570 = vrot.slane %v569, 1
  %v571 = vadd.f32 %v569, %v570
  %v572 = vmul.f32 %v571, 0.03125
  %v573 = vmul.f32 %v559, %v559
  %v574 = vmul.f32 %v560, %v560
  %v575 = vmul.f32 %v561, %v561
  %v576 = vmul.f32 %v562, %v562
  %v577 = vadd.f32 %v573, %v574
  %v578 = vadd.f32 %v577, %v575
  %v579 = vadd.f32 %v578, %v576
  %v580 = vrot.slane %v579, 4
  %v581 = vadd.f32 %v579, %v580
  %v582 = vrot.slane %v581, 2
  %v583 = vadd.f32 %v581, %v582
  %v584 = vrot.slane %v583, 1
  %v585 = vadd.f32 %v583, %v584
  %v586 = vmul.f32 %v585, 0.03125
  %v587 = vmul.f32 %v572, %v572
  %v588 = vsub.f32 %v586, %v587
  %v589 = vadd.f32 %v588, 1e-05
  %v590 = vrsqrt.pop %v589
  %v591 = vmul.f32 %v590, %v589
  %v592 = vmul.f32 %v591, %v590
  %v593 = vmul.f32 0.5, %v592
  %v594 = vsub.f32 1.5, %v593
  %v595 = vmul.f32 %v590, %v594
  %vm596 = vweird.f32 %v589
  %vm597 = vweird.f32 %v590
  %vm598 = vmor %vm596, %vm597
  %v599 = vsel %vm598, %v590, %v595
  %v600 = vmul.f32 %v368, %v599
  %v601 = vmul.f32 %v572, %v600
  %v602 = vsub.f32 %v369, %v601
  %v604 = vperm.slane %v600, 0
  %v606 = vmul.f32 %v559, %v604
  %v607 = vmul.f32 %v560, %v604
  %v608 = vmul.f32 %v561, %v604
  %v609 = vmul.f32 %v562, %v604
  %v611 = vperm.slane %v602, 0
  %v613 = vadd.f32 %v606, %v611
  %v614 = vadd.f32 %v607, %v611
  %v615 = vadd.f32 %v608, %v611
  %v616 = vadd.f32 %v609, %v611
  %vm617 = vcmp.ge.f32.partialorder %v613, 0.0
  %vm618 = vcmp.ge.f32.partialorder %v614, 0.0
  %vm619 = vcmp.ge.f32.partialorder %v615, 0.0
  %vm620 = vcmp.ge.f32.partialorder %v616, 0.0
  %v621 = vmul.f32 %v613, 0.01
  %v622 = vmul.f32 %v614, 0.01
  %v623 = vmul.f32 %v615, 0.01
  %v624 = vmul.f32 %v616, 0.01
  %v625 = vsel %vm617, %v613, %v621
  %v626 = vsel %vm618, %v614, %v622
  %v627 = vsel %vm619, %v615, %v623
  %v628 = vsel %vm620, %v616, %v624
  %v629 = vld [vmem:[%s8] sm:$0xff]
  %v630 = vld [vmem:[%s8 + $0x8] sm:$0xff]
  %v631 = vld [vmem:[%s8 + $0x10] sm:$0xff]
  %v632 = vld [vmem:[%s8 + $0x18] sm:$0xff]
  %v633 = vld [vmem:[%s8 + $0x20] sm:$0xff]
  %v634 = vld [vmem:[%s8 + $0x28] sm:$0xff]
  %v635 = vld [vmem:[%s8 + $0x30] sm:$0xff]
  %v636 = vld [vmem:[%s8 + $0x38] sm:$0xff]
  %v637 = vld [vmem:[%s8 + $0x40] sm:$0xff]
  %v638 = vld [vmem:[%s8 + $0x48] sm:$0xff]
  %v639 = vld [vmem:[%s8 + $0x50] sm:$0xff]
  %v640 = vld [vmem:[%s8 + $0x58] sm:$0xff]
  %v641 = vld [vmem:[%s8 + $0x60] sm:$0xff]
  %v642 = vld [vmem:[%s8 + $0x68] sm:$0xff]
  %v643 = vld [vmem:[%s8 + $0x70] sm:$0xff]
  %v644 = vld [vmem:[%s8 + $0x78] sm:$0xff]
  %v645 = vld [vmem:[%s8 + $0x80] sm:$0xff]
  %v646 = vld [vmem:[%s8 + $0x88] sm:$0xff]
  %v647 = vld [vmem:[%s8 + $0x90] sm:$0xff]
  %v648 = vld [vmem:[%s8 + $0x98] sm:$0xff]
  %v649 = vld [vmem:[%s8 + $0xa0] sm:$0xff]
  %v650 = vld [vmem:[%s8 + $0xa8] sm:$0xff]
  %v651 = vld [vmem:[%s8 + $0xb0] sm:$0xff]
  %v652 = vld [vmem:[%s8 + $0xb8] sm:$0xff]
  %v653 = vld [vmem:[%s8 + $0xc0] sm:$0xff]
  %v654 = vld [vmem:[%s8 + $0xc8] sm:$0xff]
  %v655 = vld [vmem:[%s8 + $0xd0] sm:$0xff]
  %v656 = vld [vmem:[%s8 + $0xd8] sm:$0xff]
  %v657 = vld [vmem:[%s8 + $0xe0] sm:$0xff]
  %v658 = vld [vmem:[%s8 + $0xe8] sm:$0xff]
  %v659 = vld [vmem:[%s8 + $0xf0] sm:$0xff]
  %v660 = vld [vmem:[%s8 + $0xf8] sm:$0xff]
  %v661 = vld [vmem:[%s8 + $0x100] sm:$0xff]
  %v662 = vld [vmem:[%s8 + $0x108] sm:$0xff]
  %v663 = vld [vmem:[%s8 + $0x110] sm:$0xff]
  %v664 = vld [vmem:[%s8 + $0x118] sm:$0xff]
  %v665 = vld [vmem:[%s8 + $0x120] sm:$0xff]
  %v666 = vld [vmem:[%s8 + $0x128] sm:$0xff]
  %v667 = vld [vmem:[%s8 + $0x130] sm:$0xff]
  %v668 = vld [vmem:[%s8 + $0x138] sm:$0xff]
  %v669 = vld [vmem:[%s8 + $0x140] sm:$0xff]
  %v670 = vld [vmem:[%s8 + $0x148] sm:$0xff]
  %v671 = vld [vmem:[%s8 + $0x150] sm:$0xff]
  %v672 = vld [vmem:[%s8 + $0x158] sm:$0xff]
  %v673 = vld [vmem:[%s8 + $0x160] sm:$0xff]
  %v674 = vld [vmem:[%s8 + $0x168] sm:$0xff]
  %v675 = vld [vmem:[%s8 + $0x170] sm:$0xff]
  %v676 = vld [vmem:[%s8 + $0x178] sm:$0xff]
  %v677 = vld [vmem:[%s9] sm:$0x1]
  %v678 = vld [vmem:[%s10] sm:$0x1]
  %679 = vmatpush.msra.mxu0 0.0
  %680 = vmatpush.msra.mxu0 0.0
  %681 = vmatpush.msra.mxu0 0.0
  %682 = vmatpush.msra.mxu0 0.0
  %683 = vmatpush.msra.mxu0 0.0
  %684 = vmatpush.msra.mxu0 0.0
  %685 = vmatpush.msra.mxu0 0.0
  %686 = vmatpush.msra.mxu0 0.0
  %687 = vmatpush.msra.mxu0 0.0
  %688 = vmatpush.msra.mxu0 0.0
  %689 = vmatpush.msra.mxu0 0.0
  %690 = vmatpush.msra.mxu0 0.0
  %691 = vmatpush.msra.mxu0 %v628
  %692 = vmatpush.msra.mxu0 %v627
  %693 = vmatpush.msra.mxu0 %v626
  %694 = vmatpush.msra.mxu0 %v625
  %695 = vmatmul.f32.gmra.mxu0 %v77
  %v696 = vpop.f32.mrf.mxu0
  %v697 = vadd.f32 0.0, %v696
  %698 = vmatmul.f32.gmra.mxu0 %v80
  %v699 = vpop.f32.mrf.mxu0
  %v700 = vadd.f32 0.0, %v699
  %701 = vmatmul.f32.gmra.mxu0 %v83
  %v702 = vpop.f32.mrf.mxu0
  %v703 = vadd.f32 0.0, %v702
  %704 = vmatmul.f32.gmra.mxu0 %v86
  %v705 = vpop.f32.mrf.mxu0
  %v706 = vadd.f32 0.0, %v705
  %707 = vdwg.mxu0
  %708 = vmatpush.msra.mxu0 0.0
  %709 = vmatpush.msra.mxu0 0.0
  %710 = vmatpush.msra.mxu0 0.0
  %711 = vmatpush.msra.mxu0 0.0
  %712 = vmatpush.msra.mxu0 0.0
  %713 = vmatpush.msra.mxu0 0.0
  %714 = vmatpush.msra.mxu0 0.0
  %715 = vmatpush.msra.mxu0 0.0
  %716 = vmatpush.msra.mxu0 0.0
  %717 = vmatpush.msra.mxu0 0.0
  %718 = vmatpush.msra.mxu0 0.0
  %719 = vmatpush.msra.mxu0 0.0
  %720 = vmatpush.msra.mxu0 %v706
  %721 = vmatpush.msra.mxu0 %v703
  %722 = vmatpush.msra.mxu0 %v700
  %723 = vmatpush.msra.mxu0 %v697
  %724 = vmatmul.f32.gmra.mxu0 %v77
  %v725 = vpop.f32.mrf.mxu0
  %v726 = vadd.f32 0.0, %v725
  %727 = vmatmul.f32.gmra.mxu0 %v80
  %v728 = vpop.f32.mrf.mxu0
  %v729 = vadd.f32 0.0, %v728
  %730 = vmatmul.f32.gmra.mxu0 %v83
  %v731 = vpop.f32.mrf.mxu0
  %v732 = vadd.f32 0.0, %v731
  %733 = vmatmul.f32.gmra.mxu0 %v86
  %v734 = vpop.f32.mrf.mxu0
  %v735 = vadd.f32 0.0, %v734
  %736 = vdwg.mxu0
  %v737 = vmul.f32 %v726, 2.0
  %v738 = vmul.f32 %v729, 2.0
  %v739 = vmul.f32 %v732, 2.0
  %v740 = vmul.f32 %v735, 2.0
  %v741 = vsub.f32 %v737, %v625
  %v742 = vsub.f32 %v738, %v626
  %v743 = vsub.f32 %v739, %v627
  %v744 = vsub.f32 %v740, %v628
  %745 = vmatpush.msra.mxu0 %v660
  %746 = vmatpush.msra.mxu0 %v659
  %747 = vmatpush.msra.mxu0 %v658
  %748 = vmatpush.msra.mxu0 %v657
  %749 = vmatpush.msra.mxu0 %v656
  %750 = vmatpush.msra.mxu0 %v655
  %751 = vmatpush.msra.mxu0 %v654
  %752 = vmatpush.msra.mxu0 %v653
  %753 = vmatpush.msra.mxu0 %v652
  %754 = vmatpush.msra.mxu0 %v651
  %755 = vmatpush.msra.mxu0 %v650
  %756 = vmatpush.msra.mxu0 %v649
  %757 = vmatpush.msra.mxu0 %v648
  %758 = vmatpush.msra.mxu0 %v647
  %759 = vmatpush.msra.mxu0 %v646
  %760 = vmatpush.msra.mxu0 %v645
  %761 = vmatmul.f32.gmra.mxu0 %v697
  %v762 = vpop.f32.mrf.mxu0
  %v763 = vadd.f32 0.0, %v762
  %764 = vmatmul.f32.gmra.mxu0 %v700
  %v765 = vpop.f32.mrf.mxu0
  %v766 = vadd.f32 0.0, %v765
  %767 = vmatmul.f32.gmra.mxu0 %v703
  %v768 = vpop.f32.mrf.mxu0
  %v769 = vadd.f32 0.0, %v768
  %770 = vmatmul.f32.gmra.mxu0 %v706
  %v771 = vpop.f32.mrf.mxu0
  %v772 = vadd.f32 0.0, %v771
  %773 = vdwg.mxu0
  %774 = vmatpush.msra.mxu0 %v644
  %775 = vmatpush.msra.mxu0 %v643
  %776 = vmatpush.msra.mxu0 %v642
  %777 = vmatpush.msra.mxu0 %v641
  %778 = vmatpush.msra.mxu0 %v640
  %779 = vmatpush.msra.mxu0 %v639
  %780 = vmatpush.msra.mxu0 %v638
  %781 = vmatpush.msra.mxu0 %v637
  %782 = vmatpush.msra.mxu0 %v636
  %783 = vmatpush.msra.mxu0 %v635
  %784 = vmatpush.msra.mxu0 %v634
  %785 = vmatpush.msra.mxu0 %v633
  %786 = vmatpush.msra.mxu0 %v632
  %787 = vmatpush.msra.mxu0 %v631
  %788 = vmatpush.msra.mxu0 %v630
  %789 = vmatpush.msra.mxu0 %v629
  %790 = vmatmul.f32.gmra.mxu0 %v625
  %v791 = vpop.f32.mrf.mxu0
  %v792 = vadd.f32 %v763, %v791
  %793 = vmatmul.f32.gmra.mxu0 %v626
  %v794 = vpop.f32.mrf.mxu0
  %v795 = vadd.f32 %v766, %v794
  %796 = vmatmul.f32.gmra.mxu0 %v627
  %v797 = vpop.f32.mrf.mxu0
  %v798 = vadd.f32 %v769, %v797
  %799 = vmatmul.f32.gmra.mxu0 %v628
  %v800 = vpop.f32.mrf.mxu0
  %v801 = vadd.f32 %v772, %v800
  %802 = vdwg.mxu0
  %803 = vmatpush.msra.mxu0 %v676
  %804 = vmatpush.msra.mxu0 %v675
  %805 = vmatpush.msra.mxu0 %v674
  %806 = vmatpush.msra.mxu0 %v673
  %807 = vmatpush.msra.mxu0 %v672
  %808 = vmatpush.msra.mxu0 %v671
  %809 = vmatpush.msra.mxu0 %v670
  %810 = vmatpush.msra.mxu0 %v669
  %811 = vmatpush.msra.mxu0 %v668
  %812 = vmatpush.msra.mxu0 %v667
  %813 = vmatpush.msra.mxu0 %v666
  %814 = vmatpush.msra.mxu0 %v665
  %815 = vmatpush.msra.mxu0 %v664
  %816 = vmatpush.msra.mxu0 %v663
  %817 = vmatpush.msra.mxu0 %v662
  %818 = vmatpush.msra.mxu0 %v661
  %819 = vmatmul.f32.gmra.mxu0 %v741
  %v820 = vpop.f32.mrf.mxu0
  %v821 = vadd.f32 0.0, %v820
  %822 = vmatmul.f32.gmra.mxu0 %v742
  %v823 = vpop.f32.mrf.mxu0
  %v824 = vadd.f32 0.0, %v823
  %825 = vmatmul.f32.gmra.mxu0 %v743
  %v826 = vpop.f32.mrf.mxu0
  %v827 = vadd.f32 0.0, %v826
  %828 = vmatmul.f32.gmra.mxu0 %v744
  %v829 = vpop.f32.mrf.mxu0
  %v830 = vadd.f32 0.0, %v829
  %831 = vdwg.mxu0
  %v832 = vadd.f32 %v792, %v821
  %v833 = vadd.f32 %v795, %v824
  %v834 = vadd.f32 %v798, %v827
  %v835 = vadd.f32 %v801, %v830
  %v836 = vadd.f32 %v832, %v833
  %v837 = vadd.f32 %v836, %v834
  %v838 = vadd.f32 %v837, %v835
  %v839 = vrot.slane %v838, 4
  %v840 = vadd.f32 %v838, %v839
  %v841 = vrot.slane %v840, 2
  %v842 = vadd.f32 %v840, %v841
  %v843 = vrot.slane %v842, 1
  %v844 = vadd.f32 %v842, %v843
  %v845 = vmul.f32 %v844, 0.03125
  %v846 = vmul.f32 %v832, %v832
  %v847 = vmul.f32 %v833, %v833
  %v848 = vmul.f32 %v834, %v834
  %v849 = vmul.f32 %v835, %v835
  %v850 = vadd.f32 %v846, %v847
  %v851 = vadd.f32 %v850, %v848
  %v852 = vadd.f32 %v851, %v849
  %v853 = vrot.slane %v852, 4
  %v854 = vadd.f32 %v852, %v853
  %v855 = vrot.slane %v854, 2
  %v856 = vadd.f32 %v854, %v855
  %v857 = vrot.slane %v856, 1
  %v858 = vadd.f32 %v856, %v857
  %v859 = vmul.f32 %v858, 0.03125
  %v860 = vmul.f32 %v845, %v845
  %v861 = vsub.f32 %v859, %v860
  %v862 = vadd.f32 %v861, 1e-05
  %v863 = vrsqrt.pop %v862
  %v864 = vmul.f32 %v863, %v862
  %v865 = vmul.f32 %v864, %v863
  %v866 = vmul.f32 0.5, %v865
  %v867 = vsub.f32 1.5, %v866
  %v868 = vmul.f32 %v863, %v867
  %vm869 = vweird.f32 %v862
  %vm870 = vweird.f32 %v863
  %vm871 = vmor %vm869, %vm870
  %v872 = vsel %vm871, %v863, %v868
  %v873 = vmul.f32 %v677, %v872
  %v874 = vmul.f32 %v845, %v873
  %v875 = vsub.f32 %v678, %v874
  %v877 = vperm.slane %v873, 0
  %v879 = vmul.f32 %v832, %v877
  %v880 = vmul.f32 %v833, %v877
  %v881 = vmul.f32 %v834, %v877
  %v882 = vmul.f32 %v835, %v877
  %v884 = vperm.slane %v875, 0
  %v886 = vadd.f32 %v879, %v884
  %v887 = vadd.f32 %v880, %v884
  %v888 = vadd.f32 %v881, %v884
  %v889 = vadd.f32 %v882, %v884
  %vm890 = vcmp.ge.f32.partialorder %v886, 0.0
  %vm891 = vcmp.ge.f32.partialorder %v887, 0.0
  %vm892 = vcmp.ge.f32.partialorder %v888, 0.0
  %vm893 = vcmp.ge.f32.partialorder %v889, 0.0
  %v894 = vmul.f32 %v886, 0.01
  %v895 = vmul.f32 %v887, 0.01
  %v896 = vmul.f32 %v888, 0.01
  %v897 = vmul.f32 %v889, 0.01
  %v898 = vsel %vm890, %v886, %v894
  %v899 = vsel %vm891, %v887, %v895
  %v900 = vsel %vm892, %v888, %v896
  %v901 = vsel %vm893, %v889, %v897
  %v902 = vld [vmem:[%s11] sm:$0xff]
  %v903 = vld [vmem:[%s11 + $0x8] sm:$0xff]
  %v904 = vld [vmem:[%s11 + $0x10] sm:$0xff]
  %v905 = vld [vmem:[%s11 + $0x18] sm:$0xff]
  %v906 = vld [vmem:[%s11 + $0x20] sm:$0xff]
  %v907 = vld [vmem:[%s11 + $0x28] sm:$0xff]
  %v908 = vld [vmem:[%s11 + $0x30] sm:$0xff]
  %v909 = vld [vmem:[%s11 + $0x38] sm:$0xff]
  %v910 = vld [vmem:[%s11 + $0x40] sm:$0xff]
  %v911 = vld [vmem:[%s11 + $0x48] sm:$0xff]
  %v912 = vld [vmem:[%s11 + $0x50] sm:$0xff]
  %v913 = vld [vmem:[%s11 + $0x58] sm:$0xff]
  %v914 = vld [vmem:[%s11 + $0x60] sm:$0xff]
  %v915 = vld [vmem:[%s11 + $0x68] sm:$0xff]
  %v916 = vld [vmem:[%s11 + $0x70] sm:$0xff]
  %v917 = vld [vmem:[%s11 + $0x78] sm:$0xff]
  %v918 = vld [vmem:[%s11 + $0x80] sm:$0xff]
  %v919 = vld [vmem:[%s11 + $0x88] sm:$0xff]
  %v920 = vld [vmem:[%s11 + $0x90] sm:$0xff]
  %v921 = vld [vmem:[%s11 + $0x98] sm:$0xff]
  %v922 = vld [vmem:[%s11 + $0xa0] sm:$0xff]
  %v923 = vld [vmem:[%s11 + $0xa8] sm:$0xff]
  %v924 = vld [vmem:[%s11 + $0xb0] sm:$0xff]
  %v925 = vld [vmem:[%s11 + $0xb8] sm:$0xff]
  %v926 = vld [vmem:[%s11 + $0xc0] sm:$0xff]
  %v927 = vld [vmem:[%s11 + $0xc8] sm:$0xff]
  %v928 = vld [vmem:[%s11 + $0xd0] sm:$0xff]
  %v929 = vld [vmem:[%s11 + $0xd8] sm:$0xff]
  %v930 = vld [vmem:[%s11 + $0xe0] sm:$0xff]
  %v931 = vld [vmem:[%s11 + $0xe8] sm:$0xff]
  %v932 = vld [vmem:[%s11 + $0xf0] sm:$0xff]
  %v933 = vld [vmem:[%s11 + $0xf8] sm:$0xff]
  %v934 = vld [vmem:[%s11 + $0x100] sm:$0xff]
  %v935 = vld [vmem:[%s11 + $0x108] sm:$0xff]
  %v936 = vld [vmem:[%s11 + $0x110] sm:$0xff]
  %v937 = vld [vmem:[%s11 + $0x118] sm:$0xff]
  %v938 = vld [vmem:[%s11 + $0x120] sm:$0xff]
  %v939 = vld [vmem:[%s11 + $0x128] sm:$0xff]
  %v940 = vld [vmem:[%s11 + $0x130] sm:$0xff]
  %v941 = vld [vmem:[%s11 + $0x138] sm:$0xff]
  %v942 = vld [vmem:[%s11 + $0x140] sm:$0xff]
  %v943 = vld [vmem:[%s11 + $0x148] sm:$0xff]
  %v944 = vld [vmem:[%s11 + $0x150] sm:$0xff]
  %v945 = vld [vmem:[%s11 + $0x158] sm:$0xff]
  %v946 = vld [vmem:[%s11 + $0x160] sm:$0xff]
  %v947 = vld [vmem:[%s11 + $0x168] sm:$0xff]
  %v948 = vld [vmem:[%s11 + $0x170] sm:$0xff]
  %v949 = vld [vmem:[%s11 + $0x178] sm:$0xff]
  %v950 = vld [vmem:[%s12] sm:$0x1]
  %v951 = vld [vmem:[%s13] sm:$0x1]
  %952 = vmatpush.msra.mxu0 0.0
  %953 = vmatpush.msra.mxu0 0.0
  %954 = vmatpush.msra.mxu0 0.0
  %955 = vmatpush.msra.mxu0 0.0
  %956 = vmatpush.msra.mxu0 0.0
  %957 = vmatpush.msra.mxu0 0.0
  %958 = vmatpush.msra.mxu0 0.0
  %959 = vmatpush.msra.mxu0 0.0
  %960 = vmatpush.msra.mxu0 0.0
  %961 = vmatpush.msra.mxu0 0.0
  %962 = vmatpush.msra.mxu0 0.0
  %963 = vmatpush.msra.mxu0 0.0
  %964 = vmatpush.msra.mxu0 %v901
  %965 = vmatpush.msra.mxu0 %v900
  %966 = vmatpush.msra.mxu0 %v899
  %967 = vmatpush.msra.mxu0 %v898
  %968 = vmatmul.f32.gmra.mxu0 %v77
  %v969 = vpop.f32.mrf.mxu0
  %v970 = vadd.f32 0.0, %v969
  %971 = vmatmul.f32.gmra.mxu0 %v80
  %v972 = vpop.f32.mrf.mxu0
  %v973 = vadd.f32 0.0, %v972
  %974 = vmatmul.f32.gmra.mxu0 %v83
  %v975 = vpop.f32.mrf.mxu0
  %v976 = vadd.f32 0.0, %v975
  %977 = vmatmul.f32.gmra.mxu0 %v86
  %v978 = vpop.f32.mrf.mxu0
  %v979 = vadd.f32 0.0, %v978
  %980 = vdwg.mxu0
  %981 = vmatpush.msra.mxu0 0.0
  %982 = vmatpush.msra.mxu0 0.0
  %983 = vmatpush.msra.mxu0 0.0
  %984 = vmatpush.msra.mxu0 0.0
  %985 = vmatpush.msra.mxu0 0.0
  %986 = vmatpush.msra.mxu0 0.0
  %987 = vmatpush.msra.mxu0 0.0
  %988 = vmatpush.msra.mxu0 0.0
  %989 = vmatpush.msra.mxu0 0.0
  %990 = vmatpush.msra.mxu0 0.0
  %991 = vmatpush.msra.mxu0 0.0
  %992 = vmatpush.msra.mxu0 0.0
  %993 = vmatpush.msra.mxu0 %v979
  %994 = vmatpush.msra.mxu0 %v976
  %995 = vmatpush.msra.mxu0 %v973
  %996 = vmatpush.msra.mxu0 %v970
  %997 = vmatmul.f32.gmra.mxu0 %v77
  %v998 = vpop.f32.mrf.mxu0
  %v999 = vadd.f32 0.0, %v998
  %1000 = vmatmul.f32.gmra.mxu0 %v80
  %v1001 = vpop.f32.mrf.mxu0
  %v1002 = vadd.f32 0.0, %v1001
  %1003 = vmatmul.f32.gmra.mxu0 %v83
  %v1004 = vpop.f32.mrf.mxu0
  %v1005 = vadd.f32 0.0, %v1004
  %1006 = vmatmul.f32.gmra.mxu0 %v86
  %v1007 = vpop.f32.mrf.mxu0
  %v1008 = vadd.f32 0.0, %v1007
  %1009 = vdwg.mxu0
  %v1010 = vmul.f32 %v999, 2.0
  %v1011 = vmul.f32 %v1002, 2.0
  %v1012 = vmul.f32 %v1005, 2.0
  %v1013 = vmul.f32 %v1008, 2.0
  %v1014 = vsub.f32 %v1010, %v898
  %v1015 = vsub.f32 %v1011, %v899
  %v1016 = vsub.f32 %v1012, %v900
  %v1017 = vsub.f32 %v1013, %v901
  %1018 = vmatpush.msra.mxu0 %v933
  %1019 = vmatpush.msra.mxu0 %v932
  %1020 = vmatpush.msra.mxu0 %v931
  %1021 = vmatpush.msra.mxu0 %v930
  %1022 = vmatpush.msra.mxu0 %v929
  %1023 = vmatpush.msra.mxu0 %v928
  %1024 = vmatpush.msra.mxu0 %v927
  %1025 = vmatpush.msra.mxu0 %v926
  %1026 = vmatpush.msra.mxu0 %v925
  %1027 = vmatpush.msra.mxu0 %v924
  %1028 = vmatpush.msra.mxu0 %v923
  %1029 = vmatpush.msra.mxu0 %v922
  %1030 = vmatpush.msra.mxu0 %v921
  %1031 = vmatpush.msra.mxu0 %v920
  %1032 = vmatpush.msra.mxu0 %v919
  %1033 = vmatpush.msra.mxu0 %v918
  %1034 = vmatmul.f32.gmra.mxu0 %v970
  %v1035 = vpop.f32.mrf.mxu0
  %v1036 = vadd.f32 0.0, %v1035
  %1037 = vmatmul.f32.gmra.mxu0 %v973
  %v1038 = vpop.f32.mrf.mxu0
  %v1039 = vadd.f32 0.0, %v1038
  %1040 = vmatmul.f32.gmra.mxu0 %v976
  %v1041 = vpop.f32.mrf.mxu0
  %v1042 = vadd.f32 0.0, %v1041
  %1043 = vmatmul.f32.gmra.mxu0 %v979
  %v1044 = vpop.f32.mrf.mxu0
  %v1045 = vadd.f32 0.0, %v1044
  %1046 = vdwg.mxu0
  %1047 = vmatpush.msra.mxu0 %v917
  %1048 = vmatpush.msra.mxu0 %v916
  %1049 = vmatpush.msra.mxu0 %v915
  %1050 = vmatpush.msra.mxu0 %v914
  %1051 = vmatpush.msra.mxu0 %v913
  %1052 = vmatpush.msra.mxu0 %v912
  %1053 = vmatpush.msra.mxu0 %v911
  %1054 = vmatpush.msra.mxu0 %v910
  %1055 = vmatpush.msra.mxu0 %v909
  %1056 = vmatpush.msra.mxu0 %v908
  %1057 = vmatpush.msra.mxu0 %v907
  %1058 = vmatpush.msra.mxu0 %v906
  %1059 = vmatpush.msra.mxu0 %v905
  %1060 = vmatpush.msra.mxu0 %v904
  %1061 = vmatpush.msra.mxu0 %v903
  %1062 = vmatpush.msra.mxu0 %v902
  %1063 = vmatmul.f32.gmra.mxu0 %v898
  %v1064 = vpop.f32.mrf.mxu0
  %v1065 = vadd.f32 %v1036, %v1064
  %1066 = vmatmul.f32.gmra.mxu0 %v899
  %v1067 = vpop.f32.mrf.mxu0
  %v1068 = vadd.f32 %v1039, %v1067
  %1069 = vmatmul.f32.gmra.mxu0 %v900
  %v1070 = vpop.f32.mrf.mxu0
  %v1071 = vadd.f32 %v1042, %v1070
  %1072 = vmatmul.f32.gmra.mxu0 %v901
  %v1073 = vpop.f32.mrf.mxu0
  %v1074 = vadd.f32 %v1045, %v1073
  %1075 = vdwg.mxu0
  %1076 = vmatpush.msra.mxu0 %v949
  %1077 = vmatpush.msra.mxu0 %v948
  %1078 = vmatpush.msra.mxu0 %v947
  %1079 = vmatpush.msra.mxu0 %v946
  %1080 = vmatpush.msra.mxu0 %v945
  %1081 = vmatpush.msra.mxu0 %v944
  %1082 = vmatpush.msra.mxu0 %v943
  %1083 = vmatpush.msra.mxu0 %v942
  %1084 = vmatpush.msra.mxu0 %v941
  %1085 = vmatpush.msra.mxu0 %v940
  %1086 = vmatpush.msra.mxu0 %v939
  %1087 = vmatpush.msra.mxu0 %v938
  %1088 = vmatpush.msra.mxu0 %v937
  %1089 = vmatpush.msra.mxu0 %v936
  %1090 = vmatpush.msra.mxu0 %v935
  %1091 = vmatpush.msra.mxu0 %v934
  %1092 = vmatmul.f32.gmra.mxu0 %v1014
  %v1093 = vpop.f32.mrf.mxu0
  %v1094 = vadd.f32 0.0, %v1093
  %1095 = vmatmul.f32.gmra.mxu0 %v1015
  %v1096 = vpop.f32.mrf.mxu0
  %v1097 = vadd.f32 0.0, %v1096
  %1098 = vmatmul.f32.gmra.mxu0 %v1016
  %v1099 = vpop.f32.mrf.mxu0
  %v1100 = vadd.f32 0.0, %v1099
  %1101 = vmatmul.f32.gmra.mxu0 %v1017
  %v1102 = vpop.f32.mrf.mxu0
  %v1103 = vadd.f32 0.0, %v1102
  %1104 = vdwg.mxu0
  %v1105 = vadd.f32 %v1065, %v1094
  %v1106 = vadd.f32 %v1068, %v1097
  %v1107 = vadd.f32 %v1071, %v1100
  %v1108 = vadd.f32 %v1074, %v1103
  %v1109 = vsel %vm75, %v1105, 0.0
  %v1110 = vsel %vm75, %v1106, 0.0
  %v1111 = vadd.f32 %v1109, %v1110
  %v1112 = vsel %vm75, %v1107, 0.0
  %v1113 = vadd.f32 %v1111, %v1112
  %v1114 = vsel %vm75, %v1108, 0.0
  %v1115 = vadd.f32 %v1113, %v1114
  %v1116 = vrot.slane %v1115, 4
  %v1117 = vadd.f32 %v1115, %v1116
  %v1118 = vrot.slane %v1117, 2
  %v1119 = vadd.f32 %v1117, %v1118
  %v1120 = vrot.slane %v1119, 1
  %v1121 = vadd.f32 %v1119, %v1120
  %v1122 = vmul.f32 %v1121, 0.03125
  %v1123 = vmul.f32 %v1105, %v1105
  %v1124 = vmul.f32 %v1106, %v1106
  %v1125 = vmul.f32 %v1107, %v1107
  %v1126 = vmul.f32 %v1108, %v1108
  %v1127 = vsel %vm75, %v1123, 0.0
  %v1128 = vsel %vm75, %v1124, 0.0
  %v1129 = vadd.f32 %v1127, %v1128
  %v1130 = vsel %vm75, %v1125, 0.0
  %v1131 = vadd.f32 %v1129, %v1130
  %v1132 = vsel %vm75, %v1126, 0.0
  %v1133 = vadd.f32 %v1131, %v1132
  %v1134 = vrot.slane %v1133, 4
  %v1135 = vadd.f32 %v1133, %v1134
  %v1136 = vrot.slane %v1135, 2
  %v1137 = vadd.f32 %v1135, %v1136
  %v1138 = vrot.slane %v1137, 1
  %v1139 = vadd.f32 %v1137, %v1138
  %v1140 = vmul.f32 %v1139, 0.03125
  %v1141 = vmul.f32 %v1122, %v1122
  %v1142 = vsub.f32 %v1140, %v1141
  %v1143 = vadd.f32 %v1142, 1e-05
  %v1144 = vrsqrt.pop %v1143
  %v1145 = vmul.f32 %v1144, %v1143
  %v1146 = vmul.f32 %v1145, %v1144
  %v1147 = vmul.f32 0.5, %v1146
  %v1148 = vsub.f32 1.5, %v1147
  %v1149 = vmul.f32 %v1144, %v1148
  %vm1150 = vweird.f32 %v1143
  %vm1151 = vweird.f32 %v1144
  %vm1152 = vmor %vm1150, %vm1151
  %v1153 = vsel %vm1152, %v1144, %v1149
  %v1154 = vmul.f32 %v950, %v1153
  %v1155 = vmul.f32 %v1122, %v1154
  %v1156 = vsub.f32 %v951, %v1155
  %v1158 = vperm.slane %v1154, 0
  %v1160 = vmul.f32 %v1105, %v1158
  %v1161 = vmul.f32 %v1106, %v1158
  %v1162 = vmul.f32 %v1107, %v1158
  %v1163 = vmul.f32 %v1108, %v1158
  %v1165 = vperm.slane %v1156, 0
  %v1167 = vadd.f32 %v1160, %v1165
  %v1168 = vadd.f32 %v1161, %v1165
  %v1169 = vadd.f32 %v1162, %v1165
  %v1170 = vadd.f32 %v1163, %v1165
  %vm1171 = vcmp.ge.f32.partialorder %v1167, 0.0
  %vm1172 = vcmp.ge.f32.partialorder %v1168, 0.0
  %vm1173 = vcmp.ge.f32.partialorder %v1169, 0.0
  %vm1174 = vcmp.ge.f32.partialorder %v1170, 0.0
  %v1175 = vmul.f32 %v1167, 0.01
  %v1176 = vmul.f32 %v1168, 0.01
  %v1177 = vmul.f32 %v1169, 0.01
  %v1178 = vmul.f32 %v1170, 0.01
  %v1179 = vsel %vm1171, %v1167, %v1175
  %v1180 = vsel %vm1172, %v1168, %v1176
  %v1181 = vsel %vm1173, %v1169, %v1177
  %v1182 = vsel %vm1174, %v1170, %v1178
  %v1183 = vld [vmem:[%s14] sm:$0xff]
  %v1184 = vld [vmem:[%s14 + $0x8] sm:$0xff]
  %v1185 = vld [vmem:[%s14 + $0x10] sm:$0xff]
  %v1186 = vld [vmem:[%s14 + $0x18] sm:$0xff]
  %v1187 = vld [vmem:[%s14 + $0x20] sm:$0xff]
  %v1188 = vld [vmem:[%s14 + $0x28] sm:$0xff]
  %v1189 = vld [vmem:[%s14 + $0x30] sm:$0xff]
  %v1190 = vld [vmem:[%s14 + $0x38] sm:$0xff]
  %v1191 = vld [vmem:[%s14 + $0x40] sm:$0xff]
  %v1192 = vld [vmem:[%s14 + $0x48] sm:$0xff]
  %v1193 = vld [vmem:[%s14 + $0x50] sm:$0xff]
  %v1194 = vld [vmem:[%s14 + $0x58] sm:$0xff]
  %v1195 = vld [vmem:[%s15] sm:$0x1]
  %v1196 = vld [vmem:[%s16] sm:$0x1]
  %1197 = vmatpush.msra.mxu0 0.0
  %1198 = vmatpush.msra.mxu0 0.0
  %1199 = vmatpush.msra.mxu0 0.0
  %1200 = vmatpush.msra.mxu0 0.0
  %1201 = vmatpush.msra.mxu0 0.0
  %1202 = vmatpush.msra.mxu0 0.0
  %1203 = vmatpush.msra.mxu0 0.0
  %1204 = vmatpush.msra.mxu0 0.0
  %1205 = vmatpush.msra.mxu0 0.0
  %1206 = vmatpush.msra.mxu0 0.0
  %1207 = vmatpush.msra.mxu0 0.0
  %1208 = vmatpush.msra.mxu0 0.0
  %1209 = vmatpush.msra.mxu0 %v1182
  %1210 = vmatpush.msra.mxu0 %v1181
  %1211 = vmatpush.msra.mxu0 %v1180
  %1212 = vmatpush.msra.mxu0 %v1179
  %1213 = vmatmul.f32.gmra.mxu0 %v77
  %v1214 = vpop.f32.mrf.mxu0
  %v1215 = vadd.f32 0.0, %v1214
  %1216 = vmatmul.f32.gmra.mxu0 %v80
  %v1217 = vpop.f32.mrf.mxu0
  %v1218 = vadd.f32 0.0, %v1217
  %1219 = vmatmul.f32.gmra.mxu0 %v83
  %v1220 = vpop.f32.mrf.mxu0
  %v1221 = vadd.f32 0.0, %v1220
  %1222 = vmatmul.f32.gmra.mxu0 %v86
  %v1223 = vpop.f32.mrf.mxu0
  %v1224 = vadd.f32 0.0, %v1223
  %1225 = vdwg.mxu0
  %1226 = vmatpush.msra.mxu0 0.0
  %1227 = vmatpush.msra.mxu0 0.0
  %1228 = vmatpush.msra.mxu0 0.0
  %1229 = vmatpush.msra.mxu0 0.0
  %1230 = vmatpush.msra.mxu0 0.0
  %1231 = vmatpush.msra.mxu0 0.0
  %1232 = vmatpush.msra.mxu0 0.0
  %1233 = vmatpush.msra.mxu0 0.0
  %1234 = vmatpush.msra.mxu0 0.0
  %1235 = vmatpush.msra.mxu0 0.0
  %1236 = vmatpush.msra.mxu0 0.0
  %1237 = vmatpush.msra.mxu0 0.0
  %1238 = vmatpush.msra.mxu0 %v1224
  %1239 = vmatpush.msra.mxu0 %v1221
  %1240 = vmatpush.msra.mxu0 %v1218
  %1241 = vmatpush.msra.mxu0 %v1215
  %1242 = vmatmul.f32.gmra.mxu0 %v77
  %v1243 = vpop.f32.mrf.mxu0
  %v1244 = vadd.f32 0.0, %v1243
  %1245 = vmatmul.f32.gmra.mxu0 %v80
  %v1246 = vpop.f32.mrf.mxu0
  %v1247 = vadd.f32 0.0, %v1246
  %1248 = vmatmul.f32.gmra.mxu0 %v83
  %v1249 = vpop.f32.mrf.mxu0
  %v1250 = vadd.f32 0.0, %v1249
  %1251 = vmatmul.f32.gmra.mxu0 %v86
  %v1252 = vpop.f32.mrf.mxu0
  %v1253 = vadd.f32 0.0, %v1252
  %1254 = vdwg.mxu0
  %v1255 = vmul.f32 %v1244, 2.0
  %v1256 = vmul.f32 %v1247, 2.0
  %v1257 = vmul.f32 %v1250, 2.0
  %v1258 = vmul.f32 %v1253, 2.0
  %v1259 = vsub.f32 %v1255, %v1179
  %v1260 = vsub.f32 %v1256, %v1180
  %v1261 = vsub.f32 %v1257, %v1181
  %v1262 = vsub.f32 %v1258, %v1182
  %v1264 = vsel %vm75, %v1215, 0
  %v1267 = vsel %vm75, %v1218, 0
  %v1270 = vsel %vm75, %v1221, 0
  %v1273 = vsel %vm75, %v1224, 0
  %1275 = vmatpush.msra.mxu0 0.0
  %1276 = vmatpush.msra.mxu0 0.0
  %1277 = vmatpush.msra.mxu0 0.0
  %1278 = vmatpush.msra.mxu0 0.0
  %1279 = vmatpush.msra.mxu0 0.0
  %1280 = vmatpush.msra.mxu0 0.0
  %1281 = vmatpush.msra.mxu0 0.0
  %1282 = vmatpush.msra.mxu0 0.0
  %1283 = vmatpush.msra.mxu0 0.0
  %1284 = vmatpush.msra.mxu0 0.0
  %1285 = vmatpush.msra.mxu0 0.0
  %1286 = vmatpush.msra.mxu0 0.0
  %1287 = vmatpush.msra.mxu0 %v1190
  %1288 = vmatpush.msra.mxu0 %v1189
  %1289 = vmatpush.msra.mxu0 %v1188
  %1290 = vmatpush.msra.mxu0 %v1187
  %1291 = vmatmul.f32.gmra.mxu0 %v1264
  %v1292 = vpop.f32.mrf.mxu0
  %v1293 = vadd.f32 0.0, %v1292
  %1294 = vmatmul.f32.gmra.mxu0 %v1267
  %v1295 = vpop.f32.mrf.mxu0
  %v1296 = vadd.f32 0.0, %v1295
  %1297 = vmatmul.f32.gmra.mxu0 %v1270
  %v1298 = vpop.f32.mrf.mxu0
  %v1299 = vadd.f32 0.0, %v1298
  %1300 = vmatmul.f32.gmra.mxu0 %v1273
  %v1301 = vpop.f32.mrf.mxu0
  %v1302 = vadd.f32 0.0, %v1301
  %1303 = vdwg.mxu0
  %v1305 = vsel %vm75, %v1179, 0
  %v1308 = vsel %vm75, %v1180, 0
  %v1311 = vsel %vm75, %v1181, 0
  %v1314 = vsel %vm75, %v1182, 0
  %1316 = vmatpush.msra.mxu0 0.0
  %1317 = vmatpush.msra.mxu0 0.0
  %1318 = vmatpush.msra.mxu0 0.0
  %1319 = vmatpush.msra.mxu0 0.0
  %1320 = vmatpush.msra.mxu0 0.0
  %1321 = vmatpush.msra.mxu0 0.0
  %1322 = vmatpush.msra.mxu0 0.0
  %1323 = vmatpush.msra.mxu0 0.0
  %1324 = vmatpush.msra.mxu0 0.0
  %1325 = vmatpush.msra.mxu0 0.0
  %1326 = vmatpush.msra.mxu0 0.0
  %1327 = vmatpush.msra.mxu0 0.0
  %1328 = vmatpush.msra.mxu0 %v1186
  %1329 = vmatpush.msra.mxu0 %v1185
  %1330 = vmatpush.msra.mxu0 %v1184
  %1331 = vmatpush.msra.mxu0 %v1183
  %1332 = vmatmul.f32.gmra.mxu0 %v1305
  %v1333 = vpop.f32.mrf.mxu0
  %v1334 = vadd.f32 %v1293, %v1333
  %1335 = vmatmul.f32.gmra.mxu0 %v1308
  %v1336 = vpop.f32.mrf.mxu0
  %v1337 = vadd.f32 %v1296, %v1336
  %1338 = vmatmul.f32.gmra.mxu0 %v1311
  %v1339 = vpop.f32.mrf.mxu0
  %v1340 = vadd.f32 %v1299, %v1339
  %1341 = vmatmul.f32.gmra.mxu0 %v1314
  %v1342 = vpop.f32.mrf.mxu0
  %v1343 = vadd.f32 %v1302, %v1342
  %1344 = vdwg.mxu0
  %v1346 = vsel %vm75, %v1259, 0
  %v1349 = vsel %vm75, %v1260, 0
  %v1352 = vsel %vm75, %v1261, 0
  %v1355 = vsel %vm75, %v1262, 0
  %1357 = vmatpush.msra.mxu0 0.0
  %1358 = vmatpush.msra.mxu0 0.0
  %1359 = vmatpush.msra.mxu0 0.0
  %1360 = vmatpush.msra.mxu0 0.0
  %1361 = vmatpush.msra.mxu0 0.0
  %1362 = vmatpush.msra.mxu0 0.0
  %1363 = vmatpush.msra.mxu0 0.0
  %1364 = vmatpush.msra.mxu0 0.0
  %1365 = vmatpush.msra.mxu0 0.0
  %1366 = vmatpush.msra.mxu0 0.0
  %1367 = vmatpush.msra.mxu0 0.0
  %1368 = vmatpush.msra.mxu0 0.0
  %1369 = vmatpush.msra.mxu0 %v1194
  %1370 = vmatpush.msra.mxu0 %v1193
  %1371 = vmatpush.msra.mxu0 %v1192
  %1372 = vmatpush.msra.mxu0 %v1191
  %1373 = vmatmul.f32.gmra.mxu0 %v1346
  %v1374 = vpop.f32.mrf.mxu0
  %v1375 = vadd.f32 0.0, %v1374
  %1376 = vmatmul.f32.gmra.mxu0 %v1349
  %v1377 = vpop.f32.mrf.mxu0
  %v1378 = vadd.f32 0.0, %v1377
  %1379 = vmatmul.f32.gmra.mxu0 %v1352
  %v1380 = vpop.f32.mrf.mxu0
  %v1381 = vadd.f32 0.0, %v1380
  %1382 = vmatmul.f32.gmra.mxu0 %v1355
  %v1383 = vpop.f32.mrf.mxu0
  %v1384 = vadd.f32 0.0, %v1383
  %1385 = vdwg.mxu0
  %v1386 = vadd.f32 %v1334, %v1375
  %v1387 = vadd.f32 %v1337, %v1378
  %v1388 = vadd.f32 %v1340, %v1381
  %v1389 = vadd.f32 %v1343, %v1384
  %vm1390 = vcmask 130048
  %v1391 = vsel %vm1390, %v1386, 0.0
  %v1392 = vsel %vm1390, %v1387, 0.0
  %v1393 = vadd.f32 %v1391, %v1392
  %v1394 = vsel %vm1390, %v1388, 0.0
  %v1395 = vadd.f32 %v1393, %v1394
  %v1396 = vsel %vm1390, %v1389, 0.0
  %v1397 = vadd.f32 %v1395, %v1396
  %v1398 = vrot.slane %v1397, 4
  %v1399 = vadd.f32 %v1397, %v1398
  %v1400 = vrot.slane %v1399, 2
  %v1401 = vadd.f32 %v1399, %v1400
  %v1402 = vrot.slane %v1401, 1
  %v1403 = vadd.f32 %v1401, %v1402
  %v1404 = vmul.f32 %v1403, 0.03125
  %v1405 = vmul.f32 %v1386, %v1386
  %v1406 = vmul.f32 %v1387, %v1387
  %v1407 = vmul.f32 %v1388, %v1388
  %v1408 = vmul.f32 %v1389, %v1389
  %v1409 = vsel %vm1390, %v1405, 0.0
  %v1410 = vsel %vm1390, %v1406, 0.0
  %v1411 = vadd.f32 %v1409, %v1410
  %v1412 = vsel %vm1390, %v1407, 0.0
  %v1413 = vadd.f32 %v1411, %v1412
  %v1414 = vsel %vm1390, %v1408, 0.0
  %v1415 = vadd.f32 %v1413, %v1414
  %v1416 = vrot.slane %v1415, 4
  %v1417 = vadd.f32 %v1415, %v1416
  %v1418 = vrot.slane %v1417, 2
  %v1419 = vadd.f32 %v1417, %v1418
  %v1420 = vrot.slane %v1419, 1
  %v1421 = vadd.f32 %v1419, %v1420
  %v1422 = vmul.f32 %v1421, 0.03125
  %v1423 = vmul.f32 %v1404, %v1404
  %v1424 = vsub.f32 %v1422, %v1423
  %v1425 = vadd.f32 %v1424, 1e-05
  %v1426 = vrsqrt.pop %v1425
  %v1427 = vmul.f32 %v1426, %v1425
  %v1428 = vmul.f32 %v1427, %v1426
  %v1429 = vmul.f32 0.5, %v1428
  %v1430 = vsub.f32 1.5, %v1429
  %v1431 = vmul.f32 %v1426, %v1430
  %vm1432 = vweird.f32 %v1425
  %vm1433 = vweird.f32 %v1426
  %vm1434 = vmor %vm1432, %vm1433
  %v1435 = vsel %vm1434, %v1426, %v1431
  %v1436 = vmul.f32 %v1195, %v1435
  %v1437 = vmul.f32 %v1404, %v1436
  %v1438 = vsub.f32 %v1196, %v1437
  %v1440 = vperm.slane %v1436, 0
  %v1442 = vmul.f32 %v1386, %v1440
  %v1443 = vmul.f32 %v1387, %v1440
  %v1444 = vmul.f32 %v1388, %v1440
  %v1445 = vmul.f32 %v1389, %v1440
  %v1447 = vperm.slane %v1438, 0
  %v1449 = vadd.f32 %v1442, %v1447
  %v1450 = vadd.f32 %v1443, %v1447
  %v1451 = vadd.f32 %v1444, %v1447
  %v1452 = vadd.f32 %v1445, %v1447
  %vm1453 = vcmp.ge.f32.partialorder %v1449, 0.0
  %vm1454 = vcmp.ge.f32.partialorder %v1450, 0.0
  %vm1455 = vcmp.ge.f32.partialorder %v1451, 0.0
  %vm1456 = vcmp.ge.f32.partialorder %v1452, 0.0
  %v1457 = vmul.f32 %v1449, 0.01
  %v1458 = vmul.f32 %v1450, 0.01
  %v1459 = vmul.f32 %v1451, 0.01
  %v1460 = vmul.f32 %v1452, 0.01
  %v1461 = vsel %vm1453, %v1449, %v1457
  %v1462 = vsel %vm1454, %v1450, %v1458
  %v1463 = vsel %vm1455, %v1451, %v1459
  %v1464 = vsel %vm1456, %v1452, %v1460
  %v1465 = vld [vmem:[%s17] sm:$0xff]
  %v1466 = vld [vmem:[%s17 + $0x8] sm:$0xff]
  %v1467 = vld [vmem:[%s18] sm:$0x1]
  %v1469 = vperm.slane %v1467, 0
  %v1472 = vsel %vm1390, %v1461, 0
  %v1475 = vsel %vm1390, %v1462, 0
  %v1478 = vsel %vm1390, %v1463, 0
  %v1481 = vsel %vm1390, %v1464, 0
  %1483 = vmatpush.msra.mxu0 0.0
  %1484 = vmatpush.msra.mxu0 0.0
  %1485 = vmatpush.msra.mxu0 0.0
  %1486 = vmatpush.msra.mxu0 0.0
  %1487 = vmatpush.msra.mxu0 0.0
  %1488 = vmatpush.msra.mxu0 0.0
  %1489 = vmatpush.msra.mxu0 0.0
  %1490 = vmatpush.msra.mxu0 0.0
  %1491 = vmatpush.msra.mxu0 0.0
  %1492 = vmatpush.msra.mxu0 0.0
  %1493 = vmatpush.msra.mxu0 0.0
  %1494 = vmatpush.msra.mxu0 0.0
  %1495 = vmatpush.msra.mxu0 0.0
  %1496 = vmatpush.msra.mxu0 0.0
  %1497 = vmatpush.msra.mxu0 %v1466
  %1498 = vmatpush.msra.mxu0 %v1465
  %1499 = vmatmul.f32.gmra.mxu0 %v1472
  %v1500 = vpop.f32.mrf.mxu0
  %v1501 = vadd.f32 %v1469, %v1500
  %1502 = vmatmul.f32.gmra.mxu0 %v1475
  %v1503 = vpop.f32.mrf.mxu0
  %v1504 = vadd.f32 %v1469, %v1503
  %1505 = vmatmul.f32.gmra.mxu0 %v1478
  %v1506 = vpop.f32.mrf.mxu0
  %v1507 = vadd.f32 %v1469, %v1506
  %1508 = vmatmul.f32.gmra.mxu0 %v1481
  %v1509 = vpop.f32.mrf.mxu0
  %v1510 = vadd.f32 %v1469, %v1509
  %1511 = vdwg.mxu0
  %1512 = vst [vmem:[%s19] sm:$0xff] %v1501
  %1513 = vst [vmem:[%s19 + $0x8] sm:$0xff] %v1504
  %1514 = vst [vmem:[%s19 + $0x10] sm:$0xff] %v1507
  %1515 = vst [vmem:[%s19 + $0x18] sm:$0xff] %v1510
  // Predicated region
  $region78: #{chebmeshnet_forward.1} parent=0 // pred_check
    _
  $region79: #{chebmeshnet_forward.1} parent=0 // pred_check_branch
    %1517 = sbr.rel (0) target = $region81
  $region80: #{chebmeshnet_forward.1} parent=0 // pred_region
    _
  $region81: #{chebmeshnet_forward.1} parent=0 // pred_fallthru
    _
  // Predicated region
  $region82: #{chebmeshnet_forward.1} parent=0 // pred_check
    _
  $region83: #{chebmeshnet_forward.1} parent=0 // pred_check_branch
    %1519 = sbr.rel (0) target = $region85
  $region84: #{chebmeshnet_forward.1} parent=0 // pred_region
    _
  $region85: #{chebmeshnet_forward.1} parent=0 // pred_fallthru
    _

</llo_original>
